<compile_context>
chip_gen: v6e
topology: v6e:2x2x1
jax: 0.10.0
libtpu: 0.0.40
codegen_flags: <defaults>
</compile_context>

<pallas_src>
import functools

import jax
import jax.numpy as jnp
from jax.experimental import pallas as pl
from jax.experimental.pallas import tpu as pltpu


def _sepconv_kernel(x_ref, dw1_ref, pw1_ref, b1_ref, dw2_ref, pw2_ref, b2_ref,
                    out_ref, pad1_ref, pad2_ref, *,
                    cin, cout, k, stride, pad, h, w, ho, wo, ho2, wo2):
    f32 = jnp.float32

    # ---- stage 1: zero-pad the input inside VMEM ---------------------------------
    pad1_ref[...] = jnp.zeros_like(pad1_ref)
    pad1_ref[:, pad:pad + h, pad:pad + w] = x_ref[0].astype(pad1_ref.dtype)

    # ---- stage 1: grouped/depthwise k x k conv (per-input-channel taps) ----------
    t1 = jnp.zeros((cin, ho, wo), f32)
    for a in range(k):
        for b in range(k):
            if stride == 1:
                win = pad1_ref[:, a:a + ho, b:b + wo]
            else:
                win = pad1_ref[:, pl.ds(a, ho, stride=stride),
                               pl.ds(b, wo, stride=stride)]
            t1 = t1 + win.astype(f32) * dw1_ref[a * k + b]          # (cin,1,1) bcast

    # ---- stage 1: 1x1 conv (group-sum + folded BN scale) + bias + ReLU -----------
    h1 = jnp.zeros((cout, ho, wo), f32)
    for c in range(cin):
        h1 = h1 + pw1_ref[c] * t1[c][None, :, :]                    # (cout,1,1) bcast
    h1 = jnp.maximum(h1 + b1_ref[...], 0.0)

    # ---- stage 2: zero-pad the VMEM-resident intermediate ------------------------
    pad2_ref[...] = jnp.zeros_like(pad2_ref)
    pad2_ref[:, pad:pad + ho, pad:pad + wo] = h1.astype(pad2_ref.dtype)

    # ---- stage 2: depthwise k x k conv, stride 1 ----------------------------------
    t2 = jnp.zeros((cout, ho2, wo2), f32)
    for a in range(k):
        for b in range(k):
            win = pad2_ref[:, a:a + ho2, b:b + wo2]
            t2 = t2 + win.astype(f32) * dw2_ref[a * k + b]

    # ---- stage 2: 1x1 conv (folded BN scale) + bias + ReLU ------------------------
    h2 = jnp.zeros((cout, ho2, wo2), f32)
    for c in range(cout):
        h2 = h2 + pw2_ref[c] * t2[c][None, :, :]
    h2 = jnp.maximum(h2 + b2_ref[...], 0.0)

    out_ref[0] = h2.astype(out_ref.dtype)


@functools.partial(jax.jit, static_argnames=("kernel_size", "stride", "padding"))
def sepconv_pallas(x, params, kernel_size, stride, padding):
    """x: (N, C_in, H, W) float32, NCHW. params: output of prepare_params()."""
    N, C_in, H, W = x.shape
    dw1, pw1, b1, dw2, pw2, b2 = params
    C_out = pw1.shape[1]                       # pw1: (C_in, C_out, 1, 1)
    k, s, p = kernel_size, stride, padding

    Ho = (H + 2 * p - k) // s + 1
    Wo = (W + 2 * p - k) // s + 1
    Ho2 = Ho + 2 * p - k + 1                   # second depthwise conv has stride 1
    Wo2 = Wo + 2 * p - k + 1

    kernel = functools.partial(
        _sepconv_kernel, cin=C_in, cout=C_out, k=k, stride=s, pad=p,
        h=H, w=W, ho=Ho, wo=Wo, ho2=Ho2, wo2=Wo2)

    def full(arr):
        nd = arr.ndim
        return pl.BlockSpec(arr.shape, lambda n, _nd=nd: (0,) * _nd)

    flops = 2 * N * (C_in * k * k * Ho * Wo + C_in * C_out * Ho * Wo
                     + C_out * k * k * Ho2 * Wo2 + C_out * C_out * Ho2 * Wo2)
    bytes_accessed = 4 * (N * C_in * H * W + N * C_out * Ho2 * Wo2
                          + dw1.size + pw1.size + b1.size
                          + dw2.size + pw2.size + b2.size)

    return pl.pallas_call(
        kernel,
        out_shape=jax.ShapeDtypeStruct((N, C_out, Ho2, Wo2), x.dtype),
        grid_spec=pltpu.PrefetchScalarGridSpec(
            num_scalar_prefetch=0,
            grid=(N,),
            in_specs=[
                pl.BlockSpec((1, C_in, H, W), lambda n: (n, 0, 0, 0)),
                full(dw1), full(pw1), full(b1),
                full(dw2), full(pw2), full(b2),
            ],
            out_specs=pl.BlockSpec((1, C_out, Ho2, Wo2), lambda n: (n, 0, 0, 0)),
            scratch_shapes=[
                pltpu.VMEM((C_in, H + 2 * p, W + 2 * p), jnp.float32),
                pltpu.VMEM((C_out, Ho + 2 * p, Wo + 2 * p), jnp.float32),
            ],
        ),
        compiler_params=pltpu.CompilerParams(
            dimension_semantics=("parallel",),
            vmem_limit_bytes=48 * 1024 * 1024,   # safe on v5e/v6e (128 MiB) and v7x (64 MiB)
        ),
        cost_estimate=pl.CostEstimate(
            flops=flops, transcendentals=0, bytes_accessed=bytes_accessed),
    )(x, dw1, pw1, b1, dw2, pw2, b2)


def make_raw_params(key, c_in, c_out, kernel_size, affine=True):
    """Deterministic synthetic parameters with the exact PyTorch shapes."""
    m = c_in // c_out
    k = kernel_size
    ks = jax.random.split(key, 12)

    dw1 = jax.random.normal(ks[0], (c_out, m, k, k), jnp.float32) * 0.2
    pw1 = jax.random.normal(ks[1], (c_out, c_out, 1, 1), jnp.float32) * 0.2
    g1 = (1.0 + 0.05 * jax.random.normal(ks[2], (c_out,), jnp.float32)
          if affine else jnp.ones((c_out,), jnp.float32))
    be1 = (0.05 * jax.random.normal(ks[3], (c_out,), jnp.float32)
           if affine else jnp.zeros((c_out,), jnp.float32))
    mu1 = 0.05 * jax.random.normal(ks[4], (c_out,), jnp.float32)
    var1 = jnp.abs(jax.random.normal(ks[5], (c_out,), jnp.float32)) * 0.1 + 1.0

    dw2 = jax.random.normal(ks[6], (c_out, 1, k, k), jnp.float32) * 0.2
    pw2 = jax.random.normal(ks[7], (c_out, c_out, 1, 1), jnp.float32) * 0.2
    g2 = (1.0 + 0.05 * jax.random.normal(ks[8], (c_out,), jnp.float32)
          if affine else jnp.ones((c_out,), jnp.float32))
    be2 = (0.05 * jax.random.normal(ks[9], (c_out,), jnp.float32)
           if affine else jnp.zeros((c_out,), jnp.float32))
    mu2 = 0.05 * jax.random.normal(ks[10], (c_out,), jnp.float32)
    var2 = jnp.abs(jax.random.normal(ks[11], (c_out,), jnp.float32)) * 0.1 + 1.0

    return (dw1, pw1, g1, be1, mu1, var1, dw2, pw2, g2, be2, mu2, var2)


def prepare_params(raw, c_in, c_out, kernel_size, eps=1e-5):
    """Fold eval-mode BN into the pointwise weights and reshape for the kernel."""
    (dw1, pw1, g1, be1, mu1, var1, dw2, pw2, g2, be2, mu2, var2) = raw
    k = kernel_size
    m = c_in // c_out

    s1 = g1 / jnp.sqrt(var1 + eps)
    bb1 = be1 - mu1 * s1
    s2 = g2 / jnp.sqrt(var2 + eps)
    bb2 = be2 - mu2 * s2

    # Depthwise weights flattened per *input* channel: shape (k*k, C, 1, 1),
    # entry [a*k+b, c] = dw[c // m, c % m, a, b].
    dw1_flat = jnp.transpose(dw1.reshape(c_in, k, k), (1, 2, 0))
    dw1_flat = dw1_flat.reshape(k * k, c_in)[:, :, None, None]
    dw2_flat = jnp.transpose(dw2.reshape(c_out, k, k), (1, 2, 0))
    dw2_flat = dw2_flat.reshape(k * k, c_out)[:, :, None, None]

    # Pointwise weights: fold BN scale into output rows, expand input columns over
    # the grouped-conv groups, transpose to (C_in, C_out, 1, 1) for leading-int reads.
    w1 = pw1[:, :, 0, 0] * s1[:, None]               # (C_out, C_out)
    w1 = jnp.repeat(w1, m, axis=1)                   # (C_out, C_in)
    pw1_k = jnp.transpose(w1)[:, :, None, None]      # (C_in, C_out, 1, 1)

    w2 = pw2[:, :, 0, 0] * s2[:, None]               # (C_out, C_out)
    pw2_k = jnp.transpose(w2)[:, :, None, None]      # (C_out, C_out, 1, 1)

    b1_k = bb1[:, None, None]                        # (C_out, 1, 1)
    b2_k = bb2[:, None, None]
    return (dw1_flat, pw1_k, b1_k, dw2_flat, pw2_k, b2_k)


def sepconv_ref(x, raw, kernel_size, stride, padding, eps=1e-5):
    """Pure-JAX reference using lax convolutions (eval-mode BN)."""
    (dw1, pw1, g1, be1, mu1, var1, dw2, pw2, g2, be2, mu2, var2) = raw
    c_out = pw1.shape[0]

    def conv(inp, w, s, p, groups):
        dn = jax.lax.conv_dimension_numbers(inp.shape, w.shape,
                                            ("NCHW", "OIHW", "NCHW"))
        return jax.lax.conv_general_dilated(
            inp, w, window_strides=(s, s), padding=[(p, p), (p, p)],
            dimension_numbers=dn, feature_group_count=groups)

    def bn_relu(inp, g, b, mu, var):
        inv = g / jnp.sqrt(var + eps)
        return jnp.maximum(inp * inv[None, :, None, None]
                           + (b - mu * inv)[None, :, None, None], 0.0)

    y = conv(x, dw1, stride, padding, c_out)
    y = conv(y, pw1, 1, 0, 1)
    y = bn_relu(y, g1, be1, mu1, var1)
    y = conv(y, dw2, 1, padding, c_out)
    y = conv(y, pw2, 1, 0, 1)
    y = bn_relu(y, g2, be2, mu2, var2)
    return y


if __name__ == "__main__":
    key = jax.random.PRNGKey(0)
    N, C_in, C_out, H, W = 2, 4, 4, 16, 16
    kernel_size, stride, padding = 3, 1, 1

    kx, kp = jax.random.split(key)
    x = jax.random.normal(kx, (N, C_in, H, W), jnp.float32)
    raw = make_raw_params(kp, C_in, C_out, kernel_size, affine=True)
    params = prepare_params(raw, C_in, C_out, kernel_size)

    out = sepconv_pallas(x, params, kernel_size, stride, padding)
    out = jax.block_until_ready(out)

    ref = sepconv_ref(x, raw, kernel_size, stride, padding)
    assert out.shape == ref.shape, (out.shape, ref.shape)
    assert jnp.allclose(out, ref, atol=1e-4, rtol=1e-4), \
        float(jnp.max(jnp.abs(out - ref)))

    print("KERNEL_OK")
</pallas_src>

<mosaic_0001>
module attributes {stable_mosaic.version = 11 : i64} {
  func.func @_sepconv_kernel(%arg0: i32, %arg1: memref<1x4x16x16xf32, #tpu.memory_space<vmem>>, %arg2: memref<9x4x1x1xf32, #tpu.memory_space<vmem>>, %arg3: memref<4x4x1x1xf32, #tpu.memory_space<vmem>>, %arg4: memref<4x1x1xf32, #tpu.memory_space<vmem>>, %arg5: memref<9x4x1x1xf32, #tpu.memory_space<vmem>>, %arg6: memref<4x4x1x1xf32, #tpu.memory_space<vmem>>, %arg7: memref<4x1x1xf32, #tpu.memory_space<vmem>>, %arg8: memref<1x4x16x16xf32, #tpu.memory_space<vmem>>, %arg9: memref<4x18x18xf32, #tpu.memory_space<vmem>>, %arg10: memref<4x18x18xf32, #tpu.memory_space<vmem>>) attributes {dimension_semantics = [#tpu.dimension_semantics<parallel>], iteration_bounds = array<i64: 2>, scalar_prefetch = 0 : i64, scratch_operands = 2 : i64, tpu.core_type = #tpu.core_type<tc>, window_params = [{transform_indices = @transform_0, window_bounds = array<i64: 1, 4, 16, 16>}, {pipeline_mode = #tpu.pipeline_mode<synchronous>, transform_indices = @transform_1, window_bounds = array<i64: 9, 4, 1, 1>}, {pipeline_mode = #tpu.pipeline_mode<synchronous>, transform_indices = @transform_2, window_bounds = array<i64: 4, 4, 1, 1>}, {pipeline_mode = #tpu.pipeline_mode<synchronous>, transform_indices = @transform_3, window_bounds = array<i64: 4, 1, 1>}, {pipeline_mode = #tpu.pipeline_mode<synchronous>, transform_indices = @transform_4, window_bounds = array<i64: 9, 4, 1, 1>}, {pipeline_mode = #tpu.pipeline_mode<synchronous>, transform_indices = @transform_5, window_bounds = array<i64: 4, 4, 1, 1>}, {pipeline_mode = #tpu.pipeline_mode<synchronous>, transform_indices = @transform_6, window_bounds = array<i64: 4, 1, 1>}, {transform_indices = @transform_7, window_bounds = array<i64: 1, 4, 16, 16>}]} {
    %cst = arith.constant 0.000000e+00 : f32
    %0 = vector.broadcast %cst : f32 to vector<4x18x18xf32>
    %c0 = arith.constant 0 : index
    %c0_0 = arith.constant 0 : index
    %c0_1 = arith.constant 0 : index
    %1 = vector.load %arg9[%c0, %c0_0, %c0_1] : memref<4x18x18xf32, #tpu.memory_space<vmem>>, vector<4x18x18xf32>
    tpu.vector_store %arg9[%c0, %c0_0, %c0_1], %0 {strides = array<i32>} : memref<4x18x18xf32, #tpu.memory_space<vmem>>, vector<4x18x18xf32>,
    %c0_2 = arith.constant 0 : index
    %c0_3 = arith.constant 0 : index
    %c0_4 = arith.constant 0 : index
    %c0_5 = arith.constant 0 : index
    %2 = vector.load %arg1[%c0_2, %c0_3, %c0_4, %c0_5] : memref<1x4x16x16xf32, #tpu.memory_space<vmem>>, vector<1x4x16x16xf32>
    %3 = vector.shape_cast %2 : vector<1x4x16x16xf32> to vector<4x16x16xf32>
    %c0_6 = arith.constant 0 : index
    %c1 = arith.constant 1 : index
    %c1_7 = arith.constant 1 : index
    %4 = vector.load %arg9[%c0_6, %c1, %c1_7] : memref<4x18x18xf32, #tpu.memory_space<vmem>>, vector<4x16x16xf32>
    tpu.vector_store %arg9[%c0_6, %c1, %c1_7], %3 {strides = array<i32>} : memref<4x18x18xf32, #tpu.memory_space<vmem>>, vector<4x16x16xf32>,
    %cst_8 = arith.constant 0.000000e+00 : f32
    %5 = vector.broadcast %cst_8 : f32 to vector<4x16x16xf32>
    %c0_9 = arith.constant 0 : index
    %c0_10 = arith.constant 0 : index
    %c0_11 = arith.constant 0 : index
    %6 = vector.load %arg9[%c0_9, %c0_10, %c0_11] : memref<4x18x18xf32, #tpu.memory_space<vmem>>, vector<4x16x16xf32>
    %c0_12 = arith.constant 0 : index
    %c0_13 = arith.constant 0 : index
    %c0_14 = arith.constant 0 : index
    %c0_15 = arith.constant 0 : index
    %7 = vector.load %arg2[%c0_12, %c0_13, %c0_14, %c0_15] : memref<9x4x1x1xf32, #tpu.memory_space<vmem>>, vector<1x4x1x1xf32>
    %8 = vector.shape_cast %7 : vector<1x4x1x1xf32> to vector<4x1x1xf32>
    %9 = vector.broadcast %8 : vector<4x1x1xf32> to vector<4x16x16xf32>
    %10 = arith.mulf %6, %9 : vector<4x16x16xf32>
    %11 = arith.addf %5, %10 : vector<4x16x16xf32>
    %c0_16 = arith.constant 0 : index
    %c0_17 = arith.constant 0 : index
    %c1_18 = arith.constant 1 : index
    %12 = vector.load %arg9[%c0_16, %c0_17, %c1_18] : memref<4x18x18xf32, #tpu.memory_space<vmem>>, vector<4x16x16xf32>
    %c1_19 = arith.constant 1 : index
    %c0_20 = arith.constant 0 : index
    %c0_21 = arith.constant 0 : index
    %c0_22 = arith.constant 0 : index
    %13 = vector.load %arg2[%c1_19, %c0_20, %c0_21, %c0_22] : memref<9x4x1x1xf32, #tpu.memory_space<vmem>>, vector<1x4x1x1xf32>
    %14 = vector.shape_cast %13 : vector<1x4x1x1xf32> to vector<4x1x1xf32>
    %15 = vector.broadcast %14 : vector<4x1x1xf32> to vector<4x16x16xf32>
    %16 = arith.mulf %12, %15 : vector<4x16x16xf32>
    %17 = arith.addf %11, %16 : vector<4x16x16xf32>
    %c0_23 = arith.constant 0 : index
    %c0_24 = arith.constant 0 : index
    %c2 = arith.constant 2 : index
    %18 = vector.load %arg9[%c0_23, %c0_24, %c2] : memref<4x18x18xf32, #tpu.memory_space<vmem>>, vector<4x16x16xf32>
    %c2_25 = arith.constant 2 : index
    %c0_26 = arith.constant 0 : index
    %c0_27 = arith.constant 0 : index
    %c0_28 = arith.constant 0 : index
    %19 = vector.load %arg2[%c2_25, %c0_26, %c0_27, %c0_28] : memref<9x4x1x1xf32, #tpu.memory_space<vmem>>, vector<1x4x1x1xf32>
    %20 = vector.shape_cast %19 : vector<1x4x1x1xf32> to vector<4x1x1xf32>
    %21 = vector.broadcast %20 : vector<4x1x1xf32> to vector<4x16x16xf32>
    %22 = arith.mulf %18, %21 : vector<4x16x16xf32>
    %23 = arith.addf %17, %22 : vector<4x16x16xf32>
    %c0_29 = arith.constant 0 : index
    %c1_30 = arith.constant 1 : index
    %c0_31 = arith.constant 0 : index
    %24 = vector.load %arg9[%c0_29, %c1_30, %c0_31] : memref<4x18x18xf32, #tpu.memory_space<vmem>>, vector<4x16x16xf32>
    %c3 = arith.constant 3 : index
    %c0_32 = arith.constant 0 : index
    %c0_33 = arith.constant 0 : index
    %c0_34 = arith.constant 0 : index
    %25 = vector.load %arg2[%c3, %c0_32, %c0_33, %c0_34] : memref<9x4x1x1xf32, #tpu.memory_space<vmem>>, vector<1x4x1x1xf32>
    %26 = vector.shape_cast %25 : vector<1x4x1x1xf32> to vector<4x1x1xf32>
    %27 = vector.broadcast %26 : vector<4x1x1xf32> to vector<4x16x16xf32>
    %28 = arith.mulf %24, %27 : vector<4x16x16xf32>
    %29 = arith.addf %23, %28 : vector<4x16x16xf32>
    %c0_35 = arith.constant 0 : index
    %c1_36 = arith.constant 1 : index
    %c1_37 = arith.constant 1 : index
    %30 = vector.load %arg9[%c0_35, %c1_36, %c1_37] : memref<4x18x18xf32, #tpu.memory_space<vmem>>, vector<4x16x16xf32>
    %c4 = arith.constant 4 : index
    %c0_38 = arith.constant 0 : index
    %c0_39 = arith.constant 0 : index
    %c0_40 = arith.constant 0 : index
    %31 = vector.load %arg2[%c4, %c0_38, %c0_39, %c0_40] : memref<9x4x1x1xf32, #tpu.memory_space<vmem>>, vector<1x4x1x1xf32>
    %32 = vector.shape_cast %31 : vector<1x4x1x1xf32> to vector<4x1x1xf32>
    %33 = vector.broadcast %32 : vector<4x1x1xf32> to vector<4x16x16xf32>
    %34 = arith.mulf %30, %33 : vector<4x16x16xf32>
    %35 = arith.addf %29, %34 : vector<4x16x16xf32>
    %c0_41 = arith.constant 0 : index
    %c1_42 = arith.constant 1 : index
    %c2_43 = arith.constant 2 : index
    %36 = vector.load %arg9[%c0_41, %c1_42, %c2_43] : memref<4x18x18xf32, #tpu.memory_space<vmem>>, vector<4x16x16xf32>
    %c5 = arith.constant 5 : index
    %c0_44 = arith.constant 0 : index
    %c0_45 = arith.constant 0 : index
    %c0_46 = arith.constant 0 : index
    %37 = vector.load %arg2[%c5, %c0_44, %c0_45, %c0_46] : memref<9x4x1x1xf32, #tpu.memory_space<vmem>>, vector<1x4x1x1xf32>
    %38 = vector.shape_cast %37 : vector<1x4x1x1xf32> to vector<4x1x1xf32>
    %39 = vector.broadcast %38 : vector<4x1x1xf32> to vector<4x16x16xf32>
    %40 = arith.mulf %36, %39 : vector<4x16x16xf32>
    %41 = arith.addf %35, %40 : vector<4x16x16xf32>
    %c0_47 = arith.constant 0 : index
    %c2_48 = arith.constant 2 : index
    %c0_49 = arith.constant 0 : index
    %42 = vector.load %arg9[%c0_47, %c2_48, %c0_49] : memref<4x18x18xf32, #tpu.memory_space<vmem>>, vector<4x16x16xf32>
    %c6 = arith.constant 6 : index
    %c0_50 = arith.constant 0 : index
    %c0_51 = arith.constant 0 : index
    %c0_52 = arith.constant 0 : index
    %43 = vector.load %arg2[%c6, %c0_50, %c0_51, %c0_52] : memref<9x4x1x1xf32, #tpu.memory_space<vmem>>, vector<1x4x1x1xf32>
    %44 = vector.shape_cast %43 : vector<1x4x1x1xf32> to vector<4x1x1xf32>
    %45 = vector.broadcast %44 : vector<4x1x1xf32> to vector<4x16x16xf32>
    %46 = arith.mulf %42, %45 : vector<4x16x16xf32>
    %47 = arith.addf %41, %46 : vector<4x16x16xf32>
    %c0_53 = arith.constant 0 : index
    %c2_54 = arith.constant 2 : index
    %c1_55 = arith.constant 1 : index
    %48 = vector.load %arg9[%c0_53, %c2_54, %c1_55] : memref<4x18x18xf32, #tpu.memory_space<vmem>>, vector<4x16x16xf32>
    %c7 = arith.constant 7 : index
    %c0_56 = arith.constant 0 : index
    %c0_57 = arith.constant 0 : index
    %c0_58 = arith.constant 0 : index
    %49 = vector.load %arg2[%c7, %c0_56, %c0_57, %c0_58] : memref<9x4x1x1xf32, #tpu.memory_space<vmem>>, vector<1x4x1x1xf32>
    %50 = vector.shape_cast %49 : vector<1x4x1x1xf32> to vector<4x1x1xf32>
    %51 = vector.broadcast %50 : vector<4x1x1xf32> to vector<4x16x16xf32>
    %52 = arith.mulf %48, %51 : vector<4x16x16xf32>
    %53 = arith.addf %47, %52 : vector<4x16x16xf32>
    %c0_59 = arith.constant 0 : index
    %c2_60 = arith.constant 2 : index
    %c2_61 = arith.constant 2 : index
    %54 = vector.load %arg9[%c0_59, %c2_60, %c2_61] : memref<4x18x18xf32, #tpu.memory_space<vmem>>, vector<4x16x16xf32>
    %c8 = arith.constant 8 : index
    %c0_62 = arith.constant 0 : index
    %c0_63 = arith.constant 0 : index
    %c0_64 = arith.constant 0 : index
    %55 = vector.load %arg2[%c8, %c0_62, %c0_63, %c0_64] : memref<9x4x1x1xf32, #tpu.memory_space<vmem>>, vector<1x4x1x1xf32>
    %56 = vector.shape_cast %55 : vector<1x4x1x1xf32> to vector<4x1x1xf32>
    %57 = vector.broadcast %56 : vector<4x1x1xf32> to vector<4x16x16xf32>
    %58 = arith.mulf %54, %57 : vector<4x16x16xf32>
    %59 = arith.addf %53, %58 : vector<4x16x16xf32>
    %cst_65 = arith.constant 0.000000e+00 : f32
    %60 = vector.broadcast %cst_65 : f32 to vector<4x16x16xf32>
    %c0_66 = arith.constant 0 : index
    %c0_67 = arith.constant 0 : index
    %c0_68 = arith.constant 0 : index
    %c0_69 = arith.constant 0 : index
    %61 = vector.load %arg3[%c0_66, %c0_67, %c0_68, %c0_69] : memref<4x4x1x1xf32, #tpu.memory_space<vmem>>, vector<1x4x1x1xf32>
    %62 = vector.shape_cast %61 : vector<1x4x1x1xf32> to vector<4x1x1xf32>
    %63 = vector.extract_strided_slice %59 {offsets = [0, 0, 0], sizes = [1, 16, 16], strides = [1, 1, 1]} : vector<4x16x16xf32> to vector<1x16x16xf32>
    %64 = vector.shape_cast %63 : vector<1x16x16xf32> to vector<16x16xf32>
    %65 = vector.shape_cast %64 : vector<16x16xf32> to vector<1x16x16xf32>
    %66 = vector.broadcast %62 : vector<4x1x1xf32> to vector<4x16x16xf32>
    %67 = vector.broadcast %65 : vector<1x16x16xf32> to vector<4x16x16xf32>
    %68 = arith.mulf %66, %67 : vector<4x16x16xf32>
    %69 = arith.addf %60, %68 : vector<4x16x16xf32>
    %c1_70 = arith.constant 1 : index
    %c0_71 = arith.constant 0 : index
    %c0_72 = arith.constant 0 : index
    %c0_73 = arith.constant 0 : index
    %70 = vector.load %arg3[%c1_70, %c0_71, %c0_72, %c0_73] : memref<4x4x1x1xf32, #tpu.memory_space<vmem>>, vector<1x4x1x1xf32>
    %71 = vector.shape_cast %70 : vector<1x4x1x1xf32> to vector<4x1x1xf32>
    %72 = vector.extract_strided_slice %59 {offsets = [1, 0, 0], sizes = [1, 16, 16], strides = [1, 1, 1]} : vector<4x16x16xf32> to vector<1x16x16xf32>
    %73 = vector.shape_cast %72 : vector<1x16x16xf32> to vector<16x16xf32>
    %74 = vector.shape_cast %73 : vector<16x16xf32> to vector<1x16x16xf32>
    %75 = vector.broadcast %71 : vector<4x1x1xf32> to vector<4x16x16xf32>
    %76 = vector.broadcast %74 : vector<1x16x16xf32> to vector<4x16x16xf32>
    %77 = arith.mulf %75, %76 : vector<4x16x16xf32>
    %78 = arith.addf %69, %77 : vector<4x16x16xf32>
    %c2_74 = arith.constant 2 : index
    %c0_75 = arith.constant 0 : index
    %c0_76 = arith.constant 0 : index
    %c0_77 = arith.constant 0 : index
    %79 = vector.load %arg3[%c2_74, %c0_75, %c0_76, %c0_77] : memref<4x4x1x1xf32, #tpu.memory_space<vmem>>, vector<1x4x1x1xf32>
    %80 = vector.shape_cast %79 : vector<1x4x1x1xf32> to vector<4x1x1xf32>
    %81 = vector.extract_strided_slice %59 {offsets = [2, 0, 0], sizes = [1, 16, 16], strides = [1, 1, 1]} : vector<4x16x16xf32> to vector<1x16x16xf32>
    %82 = vector.shape_cast %81 : vector<1x16x16xf32> to vector<16x16xf32>
    %83 = vector.shape_cast %82 : vector<16x16xf32> to vector<1x16x16xf32>
    %84 = vector.broadcast %80 : vector<4x1x1xf32> to vector<4x16x16xf32>
    %85 = vector.broadcast %83 : vector<1x16x16xf32> to vector<4x16x16xf32>
    %86 = arith.mulf %84, %85 : vector<4x16x16xf32>
    %87 = arith.addf %78, %86 : vector<4x16x16xf32>
    %c3_78 = arith.constant 3 : index
    %c0_79 = arith.constant 0 : index
    %c0_80 = arith.constant 0 : index
    %c0_81 = arith.constant 0 : index
    %88 = vector.load %arg3[%c3_78, %c0_79, %c0_80, %c0_81] : memref<4x4x1x1xf32, #tpu.memory_space<vmem>>, vector<1x4x1x1xf32>
    %89 = vector.shape_cast %88 : vector<1x4x1x1xf32> to vector<4x1x1xf32>
    %90 = vector.extract_strided_slice %59 {offsets = [3, 0, 0], sizes = [1, 16, 16], strides = [1, 1, 1]} : vector<4x16x16xf32> to vector<1x16x16xf32>
    %91 = vector.shape_cast %90 : vector<1x16x16xf32> to vector<16x16xf32>
    %92 = vector.shape_cast %91 : vector<16x16xf32> to vector<1x16x16xf32>
    %93 = vector.broadcast %89 : vector<4x1x1xf32> to vector<4x16x16xf32>
    %94 = vector.broadcast %92 : vector<1x16x16xf32> to vector<4x16x16xf32>
    %95 = arith.mulf %93, %94 : vector<4x16x16xf32>
    %96 = arith.addf %87, %95 : vector<4x16x16xf32>
    %c0_82 = arith.constant 0 : index
    %c0_83 = arith.constant 0 : index
    %c0_84 = arith.constant 0 : index
    %97 = vector.load %arg4[%c0_82, %c0_83, %c0_84] : memref<4x1x1xf32, #tpu.memory_space<vmem>>, vector<4x1x1xf32>
    %98 = vector.broadcast %97 : vector<4x1x1xf32> to vector<4x16x16xf32>
    %99 = arith.addf %96, %98 : vector<4x16x16xf32>
    %cst_85 = arith.constant 0.000000e+00 : f32
    %100 = vector.broadcast %cst_85 : f32 to vector<4x16x16xf32>
    %101 = arith.maximumf %99, %100 : vector<4x16x16xf32>
    %cst_86 = arith.constant 0.000000e+00 : f32
    %102 = vector.broadcast %cst_86 : f32 to vector<4x18x18xf32>
    %c0_87 = arith.constant 0 : index
    %c0_88 = arith.constant 0 : index
    %c0_89 = arith.constant 0 : index
    %103 = vector.load %arg10[%c0_87, %c0_88, %c0_89] : memref<4x18x18xf32, #tpu.memory_space<vmem>>, vector<4x18x18xf32>
    tpu.vector_store %arg10[%c0_87, %c0_88, %c0_89], %102 {strides = array<i32>} : memref<4x18x18xf32, #tpu.memory_space<vmem>>, vector<4x18x18xf32>,
    %c0_90 = arith.constant 0 : index
    %c1_91 = arith.constant 1 : index
    %c1_92 = arith.constant 1 : index
    %104 = vector.load %arg10[%c0_90, %c1_91, %c1_92] : memref<4x18x18xf32, #tpu.memory_space<vmem>>, vector<4x16x16xf32>
    tpu.vector_store %arg10[%c0_90, %c1_91, %c1_92], %101 {strides = array<i32>} : memref<4x18x18xf32, #tpu.memory_space<vmem>>, vector<4x16x16xf32>,
    %cst_93 = arith.constant 0.000000e+00 : f32
    %105 = vector.broadcast %cst_93 : f32 to vector<4x16x16xf32>
    %c0_94 = arith.constant 0 : index
    %c0_95 = arith.constant 0 : index
    %c0_96 = arith.constant 0 : index
    %106 = vector.load %arg10[%c0_94, %c0_95, %c0_96] : memref<4x18x18xf32, #tpu.memory_space<vmem>>, vector<4x16x16xf32>
    %c0_97 = arith.constant 0 : index
    %c0_98 = arith.constant 0 : index
    %c0_99 = arith.constant 0 : index
    %c0_100 = arith.constant 0 : index
    %107 = vector.load %arg5[%c0_97, %c0_98, %c0_99, %c0_100] : memref<9x4x1x1xf32, #tpu.memory_space<vmem>>, vector<1x4x1x1xf32>
    %108 = vector.shape_cast %107 : vector<1x4x1x1xf32> to vector<4x1x1xf32>
    %109 = vector.broadcast %108 : vector<4x1x1xf32> to vector<4x16x16xf32>
    %110 = arith.mulf %106, %109 : vector<4x16x16xf32>
    %111 = arith.addf %105, %110 : vector<4x16x16xf32>
    %c0_101 = arith.constant 0 : index
    %c0_102 = arith.constant 0 : index
    %c1_103 = arith.constant 1 : index
    %112 = vector.load %arg10[%c0_101, %c0_102, %c1_103] : memref<4x18x18xf32, #tpu.memory_space<vmem>>, vector<4x16x16xf32>
    %c1_104 = arith.constant 1 : index
    %c0_105 = arith.constant 0 : index
    %c0_106 = arith.constant 0 : index
    %c0_107 = arith.constant 0 : index
    %113 = vector.load %arg5[%c1_104, %c0_105, %c0_106, %c0_107] : memref<9x4x1x1xf32, #tpu.memory_space<vmem>>, vector<1x4x1x1xf32>
    %114 = vector.shape_cast %113 : vector<1x4x1x1xf32> to vector<4x1x1xf32>
    %115 = vector.broadcast %114 : vector<4x1x1xf32> to vector<4x16x16xf32>
    %116 = arith.mulf %112, %115 : vector<4x16x16xf32>
    %117 = arith.addf %111, %116 : vector<4x16x16xf32>
    %c0_108 = arith.constant 0 : index
    %c0_109 = arith.constant 0 : index
    %c2_110 = arith.constant 2 : index
    %118 = vector.load %arg10[%c0_108, %c0_109, %c2_110] : memref<4x18x18xf32, #tpu.memory_space<vmem>>, vector<4x16x16xf32>
    %c2_111 = arith.constant 2 : index
    %c0_112 = arith.constant 0 : index
    %c0_113 = arith.constant 0 : index
    %c0_114 = arith.constant 0 : index
    %119 = vector.load %arg5[%c2_111, %c0_112, %c0_113, %c0_114] : memref<9x4x1x1xf32, #tpu.memory_space<vmem>>, vector<1x4x1x1xf32>
    %120 = vector.shape_cast %119 : vector<1x4x1x1xf32> to vector<4x1x1xf32>
    %121 = vector.broadcast %120 : vector<4x1x1xf32> to vector<4x16x16xf32>
    %122 = arith.mulf %118, %121 : vector<4x16x16xf32>
    %123 = arith.addf %117, %122 : vector<4x16x16xf32>
    %c0_115 = arith.constant 0 : index
    %c1_116 = arith.constant 1 : index
    %c0_117 = arith.constant 0 : index
    %124 = vector.load %arg10[%c0_115, %c1_116, %c0_117] : memref<4x18x18xf32, #tpu.memory_space<vmem>>, vector<4x16x16xf32>
    %c3_118 = arith.constant 3 : index
    %c0_119 = arith.constant 0 : index
    %c0_120 = arith.constant 0 : index
    %c0_121 = arith.constant 0 : index
    %125 = vector.load %arg5[%c3_118, %c0_119, %c0_120, %c0_121] : memref<9x4x1x1xf32, #tpu.memory_space<vmem>>, vector<1x4x1x1xf32>
    %126 = vector.shape_cast %125 : vector<1x4x1x1xf32> to vector<4x1x1xf32>
    %127 = vector.broadcast %126 : vector<4x1x1xf32> to vector<4x16x16xf32>
    %128 = arith.mulf %124, %127 : vector<4x16x16xf32>
    %129 = arith.addf %123, %128 : vector<4x16x16xf32>
    %c0_122 = arith.constant 0 : index
    %c1_123 = arith.constant 1 : index
    %c1_124 = arith.constant 1 : index
    %130 = vector.load %arg10[%c0_122, %c1_123, %c1_124] : memref<4x18x18xf32, #tpu.memory_space<vmem>>, vector<4x16x16xf32>
    %c4_125 = arith.constant 4 : index
    %c0_126 = arith.constant 0 : index
    %c0_127 = arith.constant 0 : index
    %c0_128 = arith.constant 0 : index
    %131 = vector.load %arg5[%c4_125, %c0_126, %c0_127, %c0_128] : memref<9x4x1x1xf32, #tpu.memory_space<vmem>>, vector<1x4x1x1xf32>
    %132 = vector.shape_cast %131 : vector<1x4x1x1xf32> to vector<4x1x1xf32>
    %133 = vector.broadcast %132 : vector<4x1x1xf32> to vector<4x16x16xf32>
    %134 = arith.mulf %130, %133 : vector<4x16x16xf32>
    %135 = arith.addf %129, %134 : vector<4x16x16xf32>
    %c0_129 = arith.constant 0 : index
    %c1_130 = arith.constant 1 : index
    %c2_131 = arith.constant 2 : index
    %136 = vector.load %arg10[%c0_129, %c1_130, %c2_131] : memref<4x18x18xf32, #tpu.memory_space<vmem>>, vector<4x16x16xf32>
    %c5_132 = arith.constant 5 : index
    %c0_133 = arith.constant 0 : index
    %c0_134 = arith.constant 0 : index
    %c0_135 = arith.constant 0 : index
    %137 = vector.load %arg5[%c5_132, %c0_133, %c0_134, %c0_135] : memref<9x4x1x1xf32, #tpu.memory_space<vmem>>, vector<1x4x1x1xf32>
    %138 = vector.shape_cast %137 : vector<1x4x1x1xf32> to vector<4x1x1xf32>
    %139 = vector.broadcast %138 : vector<4x1x1xf32> to vector<4x16x16xf32>
    %140 = arith.mulf %136, %139 : vector<4x16x16xf32>
    %141 = arith.addf %135, %140 : vector<4x16x16xf32>
    %c0_136 = arith.constant 0 : index
    %c2_137 = arith.constant 2 : index
    %c0_138 = arith.constant 0 : index
    %142 = vector.load %arg10[%c0_136, %c2_137, %c0_138] : memref<4x18x18xf32, #tpu.memory_space<vmem>>, vector<4x16x16xf32>
    %c6_139 = arith.constant 6 : index
    %c0_140 = arith.constant 0 : index
    %c0_141 = arith.constant 0 : index
    %c0_142 = arith.constant 0 : index
    %143 = vector.load %arg5[%c6_139, %c0_140, %c0_141, %c0_142] : memref<9x4x1x1xf32, #tpu.memory_space<vmem>>, vector<1x4x1x1xf32>
    %144 = vector.shape_cast %143 : vector<1x4x1x1xf32> to vector<4x1x1xf32>
    %145 = vector.broadcast %144 : vector<4x1x1xf32> to vector<4x16x16xf32>
    %146 = arith.mulf %142, %145 : vector<4x16x16xf32>
    %147 = arith.addf %141, %146 : vector<4x16x16xf32>
    %c0_143 = arith.constant 0 : index
    %c2_144 = arith.constant 2 : index
    %c1_145 = arith.constant 1 : index
    %148 = vector.load %arg10[%c0_143, %c2_144, %c1_145] : memref<4x18x18xf32, #tpu.memory_space<vmem>>, vector<4x16x16xf32>
    %c7_146 = arith.constant 7 : index
    %c0_147 = arith.constant 0 : index
    %c0_148 = arith.constant 0 : index
    %c0_149 = arith.constant 0 : index
    %149 = vector.load %arg5[%c7_146, %c0_147, %c0_148, %c0_149] : memref<9x4x1x1xf32, #tpu.memory_space<vmem>>, vector<1x4x1x1xf32>
    %150 = vector.shape_cast %149 : vector<1x4x1x1xf32> to vector<4x1x1xf32>
    %151 = vector.broadcast %150 : vector<4x1x1xf32> to vector<4x16x16xf32>
    %152 = arith.mulf %148, %151 : vector<4x16x16xf32>
    %153 = arith.addf %147, %152 : vector<4x16x16xf32>
    %c0_150 = arith.constant 0 : index
    %c2_151 = arith.constant 2 : index
    %c2_152 = arith.constant 2 : index
    %154 = vector.load %arg10[%c0_150, %c2_151, %c2_152] : memref<4x18x18xf32, #tpu.memory_space<vmem>>, vector<4x16x16xf32>
    %c8_153 = arith.constant 8 : index
    %c0_154 = arith.constant 0 : index
    %c0_155 = arith.constant 0 : index
    %c0_156 = arith.constant 0 : index
    %155 = vector.load %arg5[%c8_153, %c0_154, %c0_155, %c0_156] : memref<9x4x1x1xf32, #tpu.memory_space<vmem>>, vector<1x4x1x1xf32>
    %156 = vector.shape_cast %155 : vector<1x4x1x1xf32> to vector<4x1x1xf32>
    %157 = vector.broadcast %156 : vector<4x1x1xf32> to vector<4x16x16xf32>
    %158 = arith.mulf %154, %157 : vector<4x16x16xf32>
    %159 = arith.addf %153, %158 : vector<4x16x16xf32>
    %cst_157 = arith.constant 0.000000e+00 : f32
    %160 = vector.broadcast %cst_157 : f32 to vector<4x16x16xf32>
    %c0_158 = arith.constant 0 : index
    %c0_159 = arith.constant 0 : index
    %c0_160 = arith.constant 0 : index
    %c0_161 = arith.constant 0 : index
    %161 = vector.load %arg6[%c0_158, %c0_159, %c0_160, %c0_161] : memref<4x4x1x1xf32, #tpu.memory_space<vmem>>, vector<1x4x1x1xf32>
    %162 = vector.shape_cast %161 : vector<1x4x1x1xf32> to vector<4x1x1xf32>
    %163 = vector.extract_strided_slice %159 {offsets = [0, 0, 0], sizes = [1, 16, 16], strides = [1, 1, 1]} : vector<4x16x16xf32> to vector<1x16x16xf32>
    %164 = vector.shape_cast %163 : vector<1x16x16xf32> to vector<16x16xf32>
    %165 = vector.shape_cast %164 : vector<16x16xf32> to vector<1x16x16xf32>
    %166 = vector.broadcast %162 : vector<4x1x1xf32> to vector<4x16x16xf32>
    %167 = vector.broadcast %165 : vector<1x16x16xf32> to vector<4x16x16xf32>
    %168 = arith.mulf %166, %167 : vector<4x16x16xf32>
    %169 = arith.addf %160, %168 : vector<4x16x16xf32>
    %c1_162 = arith.constant 1 : index
    %c0_163 = arith.constant 0 : index
    %c0_164 = arith.constant 0 : index
    %c0_165 = arith.constant 0 : index
    %170 = vector.load %arg6[%c1_162, %c0_163, %c0_164, %c0_165] : memref<4x4x1x1xf32, #tpu.memory_space<vmem>>, vector<1x4x1x1xf32>
    %171 = vector.shape_cast %170 : vector<1x4x1x1xf32> to vector<4x1x1xf32>
    %172 = vector.extract_strided_slice %159 {offsets = [1, 0, 0], sizes = [1, 16, 16], strides = [1, 1, 1]} : vector<4x16x16xf32> to vector<1x16x16xf32>
    %173 = vector.shape_cast %172 : vector<1x16x16xf32> to vector<16x16xf32>
    %174 = vector.shape_cast %173 : vector<16x16xf32> to vector<1x16x16xf32>
    %175 = vector.broadcast %171 : vector<4x1x1xf32> to vector<4x16x16xf32>
    %176 = vector.broadcast %174 : vector<1x16x16xf32> to vector<4x16x16xf32>
    %177 = arith.mulf %175, %176 : vector<4x16x16xf32>
    %178 = arith.addf %169, %177 : vector<4x16x16xf32>
    %c2_166 = arith.constant 2 : index
    %c0_167 = arith.constant 0 : index
    %c0_168 = arith.constant 0 : index
    %c0_169 = arith.constant 0 : index
    %179 = vector.load %arg6[%c2_166, %c0_167, %c0_168, %c0_169] : memref<4x4x1x1xf32, #tpu.memory_space<vmem>>, vector<1x4x1x1xf32>
    %180 = vector.shape_cast %179 : vector<1x4x1x1xf32> to vector<4x1x1xf32>
    %181 = vector.extract_strided_slice %159 {offsets = [2, 0, 0], sizes = [1, 16, 16], strides = [1, 1, 1]} : vector<4x16x16xf32> to vector<1x16x16xf32>
    %182 = vector.shape_cast %181 : vector<1x16x16xf32> to vector<16x16xf32>
    %183 = vector.shape_cast %182 : vector<16x16xf32> to vector<1x16x16xf32>
    %184 = vector.broadcast %180 : vector<4x1x1xf32> to vector<4x16x16xf32>
    %185 = vector.broadcast %183 : vector<1x16x16xf32> to vector<4x16x16xf32>
    %186 = arith.mulf %184, %185 : vector<4x16x16xf32>
    %187 = arith.addf %178, %186 : vector<4x16x16xf32>
    %c3_170 = arith.constant 3 : index
    %c0_171 = arith.constant 0 : index
    %c0_172 = arith.constant 0 : index
    %c0_173 = arith.constant 0 : index
    %188 = vector.load %arg6[%c3_170, %c0_171, %c0_172, %c0_173] : memref<4x4x1x1xf32, #tpu.memory_space<vmem>>, vector<1x4x1x1xf32>
    %189 = vector.shape_cast %188 : vector<1x4x1x1xf32> to vector<4x1x1xf32>
    %190 = vector.extract_strided_slice %159 {offsets = [3, 0, 0], sizes = [1, 16, 16], strides = [1, 1, 1]} : vector<4x16x16xf32> to vector<1x16x16xf32>
    %191 = vector.shape_cast %190 : vector<1x16x16xf32> to vector<16x16xf32>
    %192 = vector.shape_cast %191 : vector<16x16xf32> to vector<1x16x16xf32>
    %193 = vector.broadcast %189 : vector<4x1x1xf32> to vector<4x16x16xf32>
    %194 = vector.broadcast %192 : vector<1x16x16xf32> to vector<4x16x16xf32>
    %195 = arith.mulf %193, %194 : vector<4x16x16xf32>
    %196 = arith.addf %187, %195 : vector<4x16x16xf32>
    %c0_174 = arith.constant 0 : index
    %c0_175 = arith.constant 0 : index
    %c0_176 = arith.constant 0 : index
    %197 = vector.load %arg7[%c0_174, %c0_175, %c0_176] : memref<4x1x1xf32, #tpu.memory_space<vmem>>, vector<4x1x1xf32>
    %198 = vector.broadcast %197 : vector<4x1x1xf32> to vector<4x16x16xf32>
    %199 = arith.addf %196, %198 : vector<4x16x16xf32>
    %cst_177 = arith.constant 0.000000e+00 : f32
    %200 = vector.broadcast %cst_177 : f32 to vector<4x16x16xf32>
    %201 = arith.maximumf %199, %200 : vector<4x16x16xf32>
    %c0_178 = arith.constant 0 : index
    %c0_179 = arith.constant 0 : index
    %c0_180 = arith.constant 0 : index
    %c0_181 = arith.constant 0 : index
    %202 = vector.load %arg8[%c0_178, %c0_179, %c0_180, %c0_181] : memref<1x4x16x16xf32, #tpu.memory_space<vmem>>, vector<1x4x16x16xf32>
    %203 = vector.shape_cast %202 : vector<1x4x16x16xf32> to vector<4x16x16xf32>
    %204 = vector.shape_cast %201 : vector<4x16x16xf32> to vector<1x4x16x16xf32>
    tpu.vector_store %arg8[%c0_178, %c0_179, %c0_180, %c0_181], %204 {strides = array<i32>} : memref<1x4x16x16xf32, #tpu.memory_space<vmem>>, vector<1x4x16x16xf32>,
    return
  }
  func.func @transform_0(%arg0: i32) -> (i32, i32, i32, i32) {
    %c0_i32 = arith.constant 0 : i32
    %c0_i32_0 = arith.constant 0 : i32
    %c0_i32_1 = arith.constant 0 : i32
    %c0_i32_2 = arith.constant 0 : i32
    return %arg0, %c0_i32, %c0_i32_0, %c0_i32_1 : i32, i32, i32, i32
  }
  func.func @transform_1(%arg0: i32) -> (i32, i32, i32, i32) {
    %c0_i32 = arith.constant 0 : i32
    %c0_i32_0 = arith.constant 0 : i32
    %c0_i32_1 = arith.constant 0 : i32
    %c0_i32_2 = arith.constant 0 : i32
    %c0_i32_3 = arith.constant 0 : i32
    return %c0_i32, %c0_i32_0, %c0_i32_1, %c0_i32_2 : i32, i32, i32, i32
  }
  func.func @transform_2(%arg0: i32) -> (i32, i32, i32, i32) {
    %c0_i32 = arith.constant 0 : i32
    %c0_i32_0 = arith.constant 0 : i32
    %c0_i32_1 = arith.constant 0 : i32
    %c0_i32_2 = arith.constant 0 : i32
    %c0_i32_3 = arith.constant 0 : i32
    return %c0_i32, %c0_i32_0, %c0_i32_1, %c0_i32_2 : i32, i32, i32, i32
  }
  func.func @transform_3(%arg0: i32) -> (i32, i32, i32) {
    %c0_i32 = arith.constant 0 : i32
    %c0_i32_0 = arith.constant 0 : i32
    %c0_i32_1 = arith.constant 0 : i32
    %c0_i32_2 = arith.constant 0 : i32
    return %c0_i32, %c0_i32_0, %c0_i32_1 : i32, i32, i32
  }
  func.func @transform_4(%arg0: i32) -> (i32, i32, i32, i32) {
    %c0_i32 = arith.constant 0 : i32
    %c0_i32_0 = arith.constant 0 : i32
    %c0_i32_1 = arith.constant 0 : i32
    %c0_i32_2 = arith.constant 0 : i32
    %c0_i32_3 = arith.constant 0 : i32
    return %c0_i32, %c0_i32_0, %c0_i32_1, %c0_i32_2 : i32, i32, i32, i32
  }
  func.func @transform_5(%arg0: i32) -> (i32, i32, i32, i32) {
    %c0_i32 = arith.constant 0 : i32
    %c0_i32_0 = arith.constant 0 : i32
    %c0_i32_1 = arith.constant 0 : i32
    %c0_i32_2 = arith.constant 0 : i32
    %c0_i32_3 = arith.constant 0 : i32
    return %c0_i32, %c0_i32_0, %c0_i32_1, %c0_i32_2 : i32, i32, i32, i32
  }
  func.func @transform_6(%arg0: i32) -> (i32, i32, i32) {
    %c0_i32 = arith.constant 0 : i32
    %c0_i32_0 = arith.constant 0 : i32
    %c0_i32_1 = arith.constant 0 : i32
    %c0_i32_2 = arith.constant 0 : i32
    return %c0_i32, %c0_i32_0, %c0_i32_1 : i32, i32, i32
  }
  func.func @transform_7(%arg0: i32) -> (i32, i32, i32, i32) {
    %c0_i32 = arith.constant 0 : i32
    %c0_i32_0 = arith.constant 0 : i32
    %c0_i32_1 = arith.constant 0 : i32
    %c0_i32_2 = arith.constant 0 : i32
    return %arg0, %c0_i32, %c0_i32_0, %c0_i32_1 : i32, i32, i32, i32
  }
}

</mosaic_0001>

<llo_original>
// kernel: sepconv_pallas.1
$region0: #{sepconv_pallas.1}
  #allocation0 [shape = 'u32[]', space=smem, size = 0x4, offset = 0x4, fixed_abs, tag = 'smem constant byte address 0x4 - core index']
  #allocation1 [shape = 'u32[144,128]{1,0:T(1,128)}', space=vmem, size = 0x12000, scoped, tag = 'internal scratch']
  #allocation2 [shape = 'f32[4,18,18]{2,1,0:T(8,128)}', space=vmem, size = 0xc000, scoped, tag = 'scratch operand']
  #allocation3 [shape = 'f32[4,18,18]{2,1,0:T(8,128)}', space=vmem, size = 0xc000, scoped, tag = 'scratch operand']
  %s0 = inlined_call_operand.vmem [shape: f32[2,4,16,16], index: 0, kind: input, shape index: {}]
  %s1 = inlined_call_operand.vmem [shape: f32[9,4,1,1], index: 1, kind: input, shape index: {}]
  %s2 = inlined_call_operand.vmem [shape: f32[4,4,1,1], index: 2, kind: input, shape index: {}]
  %s3 = inlined_call_operand.vmem [shape: f32[4,1,1], index: 3, kind: input, shape index: {}]
  %s4 = inlined_call_operand.vmem [shape: f32[9,4,1,1], index: 4, kind: input, shape index: {}]
  %s5 = inlined_call_operand.vmem [shape: f32[4,4,1,1], index: 5, kind: input, shape index: {}]
  %s6 = inlined_call_operand.vmem [shape: f32[4,1,1], index: 6, kind: input, shape index: {}]
  %s7 = inlined_call_operand.hbm [shape: f32[2,4,16,16], index: 7, kind: output, shape index: {}]
  %s8 = sld [smem:[#allocation0]]
  $region61: #{sepconv_pallas.1} parent=0
    _
  %s10 = ssub.s32 1, %s8
  %s11 = scalar_select 0, %s10, %s8
  $region1: #{sepconv_pallas.1} parent=0
    #allocation4 [shape = 'u8[65536]{0}', space=vmem, size = 0x10000, scoped, tag = 'output window, operand 0']
    #allocation5 [shape = 's32[2]{0}', space=sflag, size = 0x8, scoped, tag = 'scoped memory for sepconv_pallas.1']
    %12 = vsyncpa [#allocation5], 0
    %s13 = scalar_lea.sflag [#allocation5], 1
    %14 = vsyncpa %s13, 0
    loop: start=0, step=1, limit=4
    $region2: #{sepconv_pallas.1} parent=1 // loop_pre_header
      _
    $region3: #{sepconv_pallas.1} parent=1 // loop_header
      %s16 = sphi 0, %s20
      %p17 = scmp.ge.s32.totalorder %s16, 4
      %s26 = sphi 0, %s28
      %s29 = sphi 0, %s26
      %s30 = sphi 0, %s29
      %s46 = sphi 0, %s30
      %s50 = sphi 0, %s50
      %s52 = sphi 0, %s50
      %s53 = sphi 0, %s52
      %s67 = sphi 0, %s53
      %s71 = sphi 0, %s71
      %s73 = sphi 0, %s71
      %s74 = sphi 0, %s73
      %s88 = sphi 0, %s74
      %s92 = sphi 0, %s92
      %s94 = sphi 0, %s92
      %s95 = sphi 0, %s94
      %s109 = sphi 0, %s95
      %s113 = sphi 0, %s113
      %s115 = sphi 0, %s113
      %s116 = sphi 0, %s115
      %s130 = sphi 0, %s116
      %s134 = sphi 0, %s134
      %s136 = sphi 0, %s134
      %s137 = sphi 0, %s136
      %s151 = sphi 0, %s137
      %s155 = sphi 0, %s155
      %s157 = sphi 0, %s155
      %s158 = sphi 0, %s157
      %s172 = sphi 0, %s158
      %s178 = sphi 0, %s180
      %s181 = sphi 0, %s178
      %s182 = sphi 0, %s181
      %s198 = sphi 0, %s182
    $region4: #{sepconv_pallas.1} parent=1 // loop_header_branch
      %19 = sbr.rel (%p17) target = $region8
    $region5: #{sepconv_pallas.1} parent=1 // loop_body
      %s21 = ssub.s32 %s16, 1
      %s22 = ssub.s32 %s16, 2
      %s23 = sadd.s32 %s16, 1
      %s24 = ssub.s32 %s16, %s23
      %p25 = scmp.eq.s32.totalorder %s24, 0
      %s27 = sadd.s32 %s26, 1
      %s28 = scalar_select %p25, %s26, %s27
      %p31 = pneg %p25
      %p32 = scmp.eq.s32.totalorder %s16, 1
      %p33 = por %p31, %p32
      %p34 = scmp.ne.s32.totalorder %s26, %s29
      %p35 = scmp.eq.s32.totalorder %s16, 0
      %p36 = por %p34, %p35
      %p37 = scmp.ne.s32.totalorder %s26, %s29
      %p38 = scmp.eq.s32.totalorder %s21, 1
      %p39 = por %p37, %p38
      %p40 = scmp.ne.s32.totalorder %s29, %s30
      %p41 = scmp.eq.s32.totalorder %s21, 0
      %p42 = por %p40, %p41
      %p43 = scmp.ne.s32.totalorder %s29, %s30
      %p44 = scmp.eq.s32.totalorder %s22, 1
      %p45 = por %p43, %p44
      %p47 = scmp.ne.s32.totalorder %s30, %s46
      %p48 = scmp.eq.s32.totalorder %s22, 0
      %p49 = por %p47, %p48
      %s51 = sadd.s32 %s50, 1
      %p54 = scmp.eq.s32.totalorder %s16, 1
      %p55 = scmp.ne.s32.totalorder %s50, %s52
      %p56 = scmp.eq.s32.totalorder %s16, 0
      %p57 = por %p55, %p56
      %p58 = scmp.ne.s32.totalorder %s50, %s52
      %p59 = scmp.eq.s32.totalorder %s21, 1
      %p60 = por %p58, %p59
      %p61 = scmp.ne.s32.totalorder %s52, %s53
      %p62 = scmp.eq.s32.totalorder %s21, 0
      %p63 = por %p61, %p62
      %p64 = scmp.ne.s32.totalorder %s52, %s53
      %p65 = scmp.eq.s32.totalorder %s22, 1
      %p66 = por %p64, %p65
      %p68 = scmp.ne.s32.totalorder %s53, %s67
      %p69 = scmp.eq.s32.totalorder %s22, 0
      %p70 = por %p68, %p69
      %s72 = sadd.s32 %s71, 1
      %p75 = scmp.eq.s32.totalorder %s16, 1
      %p76 = scmp.ne.s32.totalorder %s71, %s73
      %p77 = scmp.eq.s32.totalorder %s16, 0
      %p78 = por %p76, %p77
      %p79 = scmp.ne.s32.totalorder %s71, %s73
      %p80 = scmp.eq.s32.totalorder %s21, 1
      %p81 = por %p79, %p80
      %p82 = scmp.ne.s32.totalorder %s73, %s74
      %p83 = scmp.eq.s32.totalorder %s21, 0
      %p84 = por %p82, %p83
      %p85 = scmp.ne.s32.totalorder %s73, %s74
      %p86 = scmp.eq.s32.totalorder %s22, 1
      %p87 = por %p85, %p86
      %p89 = scmp.ne.s32.totalorder %s74, %s88
      %p90 = scmp.eq.s32.totalorder %s22, 0
      %p91 = por %p89, %p90
      %s93 = sadd.s32 %s92, 1
      %p96 = scmp.eq.s32.totalorder %s16, 1
      %p97 = scmp.ne.s32.totalorder %s92, %s94
      %p98 = scmp.eq.s32.totalorder %s16, 0
      %p99 = por %p97, %p98
      %p100 = scmp.ne.s32.totalorder %s92, %s94
      %p101 = scmp.eq.s32.totalorder %s21, 1
      %p102 = por %p100, %p101
      %p103 = scmp.ne.s32.totalorder %s94, %s95
      %p104 = scmp.eq.s32.totalorder %s21, 0
      %p105 = por %p103, %p104
      %p106 = scmp.ne.s32.totalorder %s94, %s95
      %p107 = scmp.eq.s32.totalorder %s22, 1
      %p108 = por %p106, %p107
      %p110 = scmp.ne.s32.totalorder %s95, %s109
      %p111 = scmp.eq.s32.totalorder %s22, 0
      %p112 = por %p110, %p111
      %s114 = sadd.s32 %s113, 1
      %p117 = scmp.eq.s32.totalorder %s16, 1
      %p118 = scmp.ne.s32.totalorder %s113, %s115
      %p119 = scmp.eq.s32.totalorder %s16, 0
      %p120 = por %p118, %p119
      %p121 = scmp.ne.s32.totalorder %s113, %s115
      %p122 = scmp.eq.s32.totalorder %s21, 1
      %p123 = por %p121, %p122
      %p124 = scmp.ne.s32.totalorder %s115, %s116
      %p125 = scmp.eq.s32.totalorder %s21, 0
      %p126 = por %p124, %p125
      %p127 = scmp.ne.s32.totalorder %s115, %s116
      %p128 = scmp.eq.s32.totalorder %s22, 1
      %p129 = por %p127, %p128
      %p131 = scmp.ne.s32.totalorder %s116, %s130
      %p132 = scmp.eq.s32.totalorder %s22, 0
      %p133 = por %p131, %p132
      %s135 = sadd.s32 %s134, 1
      %p138 = scmp.eq.s32.totalorder %s16, 1
      %p139 = scmp.ne.s32.totalorder %s134, %s136
      %p140 = scmp.eq.s32.totalorder %s16, 0
      %p141 = por %p139, %p140
      %p142 = scmp.ne.s32.totalorder %s134, %s136
      %p143 = scmp.eq.s32.totalorder %s21, 1
      %p144 = por %p142, %p143
      %p145 = scmp.ne.s32.totalorder %s136, %s137
      %p146 = scmp.eq.s32.totalorder %s21, 0
      %p147 = por %p145, %p146
      %p148 = scmp.ne.s32.totalorder %s136, %s137
      %p149 = scmp.eq.s32.totalorder %s22, 1
      %p150 = por %p148, %p149
      %p152 = scmp.ne.s32.totalorder %s137, %s151
      %p153 = scmp.eq.s32.totalorder %s22, 0
      %p154 = por %p152, %p153
      %s156 = sadd.s32 %s155, 1
      %p159 = scmp.eq.s32.totalorder %s16, 1
      %p160 = scmp.ne.s32.totalorder %s155, %s157
      %p161 = scmp.eq.s32.totalorder %s16, 0
      %p162 = por %p160, %p161
      %p163 = scmp.ne.s32.totalorder %s155, %s157
      %p164 = scmp.eq.s32.totalorder %s21, 1
      %p165 = por %p163, %p164
      %p166 = scmp.ne.s32.totalorder %s157, %s158
      %p167 = scmp.eq.s32.totalorder %s21, 0
      %p168 = por %p166, %p167
      %p169 = scmp.ne.s32.totalorder %s157, %s158
      %p170 = scmp.eq.s32.totalorder %s22, 1
      %p171 = por %p169, %p170
      %p173 = scmp.ne.s32.totalorder %s158, %s172
      %p174 = scmp.eq.s32.totalorder %s22, 0
      %p175 = por %p173, %p174
      %s176 = ssub.s32 %s16, %s23
      %p177 = scmp.eq.s32.totalorder %s176, 0
      %s179 = sadd.s32 %s178, 1
      %s180 = scalar_select %p177, %s178, %s179
      %p183 = pneg %p177
      %p184 = scmp.eq.s32.totalorder %s16, 1
      %p185 = por %p183, %p184
      %p186 = scmp.ne.s32.totalorder %s178, %s181
      %p187 = scmp.eq.s32.totalorder %s16, 0
      %p188 = por %p186, %p187
      %p189 = scmp.ne.s32.totalorder %s178, %s181
      %p190 = scmp.eq.s32.totalorder %s21, 1
      %p191 = por %p189, %p190
      %p192 = scmp.ne.s32.totalorder %s181, %s182
      %p193 = scmp.eq.s32.totalorder %s21, 0
      %p194 = por %p192, %p193
      %p195 = scmp.ne.s32.totalorder %s181, %s182
      %p196 = scmp.eq.s32.totalorder %s22, 1
      %p197 = por %p195, %p196
      %p199 = scmp.ne.s32.totalorder %s182, %s198
      %p200 = scmp.eq.s32.totalorder %s22, 0
      %p201 = por %p199, %p200
      %p202 = scmp.le.s32.totalorder 1, %s16
      %p203 = scmp.lt.s32.totalorder %s16, 3
      %p204 = pnand %p202, %p203
      %p205 = pneg %p204
      // Predicated region
      $region9: #{sepconv_pallas.1} parent=5 // pred_check
        _
      $region10: #{sepconv_pallas.1} parent=5 // pred_check_branch
        %207 = sbr.rel (%p204) target = $region12
      $region11: #{sepconv_pallas.1} parent=5 // pred_region
        %s208 = ssub.s32 %s16, 1
        // Predicated region
        $region13: #{sepconv_pallas.1} parent=11 // pred_check
          %p209 = pneg %p63
        $region14: #{sepconv_pallas.1} parent=11 // pred_check_branch
          %211 = sbr.rel (%p209) target = $region16
        $region15: #{sepconv_pallas.1} parent=11 // pred_region
          _
        $region16: #{sepconv_pallas.1} parent=11 // pred_fallthru
          _
        // Predicated region
        $region17: #{sepconv_pallas.1} parent=11 // pred_check
          %p212 = pneg %p84
        $region18: #{sepconv_pallas.1} parent=11 // pred_check_branch
          %214 = sbr.rel (%p212) target = $region20
        $region19: #{sepconv_pallas.1} parent=11 // pred_region
          _
        $region20: #{sepconv_pallas.1} parent=11 // pred_fallthru
          _
        // Predicated region
        $region21: #{sepconv_pallas.1} parent=11 // pred_check
          %p215 = pneg %p105
        $region22: #{sepconv_pallas.1} parent=11 // pred_check_branch
          %217 = sbr.rel (%p215) target = $region24
        $region23: #{sepconv_pallas.1} parent=11 // pred_region
          _
        $region24: #{sepconv_pallas.1} parent=11 // pred_fallthru
          _
        // Predicated region
        $region25: #{sepconv_pallas.1} parent=11 // pred_check
          %p218 = pneg %p126
        $region26: #{sepconv_pallas.1} parent=11 // pred_check_branch
          %220 = sbr.rel (%p218) target = $region28
        $region27: #{sepconv_pallas.1} parent=11 // pred_region
          _
        $region28: #{sepconv_pallas.1} parent=11 // pred_fallthru
          _
        // Predicated region
        $region29: #{sepconv_pallas.1} parent=11 // pred_check
          %p221 = pneg %p147
        $region30: #{sepconv_pallas.1} parent=11 // pred_check_branch
          %223 = sbr.rel (%p221) target = $region32
        $region31: #{sepconv_pallas.1} parent=11 // pred_region
          _
        $region32: #{sepconv_pallas.1} parent=11 // pred_fallthru
          _
        // Predicated region
        $region33: #{sepconv_pallas.1} parent=11 // pred_check
          %p224 = pneg %p168
        $region34: #{sepconv_pallas.1} parent=11 // pred_check_branch
          %226 = sbr.rel (%p224) target = $region36
        $region35: #{sepconv_pallas.1} parent=11 // pred_region
          _
        $region36: #{sepconv_pallas.1} parent=11 // pred_fallthru
          _
      $region12: #{sepconv_pallas.1} parent=5 // pred_fallthru
        _
      %p227 = scmp.lt.s32.totalorder %s16, 2
      // Predicated region
      $region37: #{sepconv_pallas.1} parent=5 // pred_check
        %p228 = pneg %p227
      $region38: #{sepconv_pallas.1} parent=5 // pred_check_branch
        %230 = sbr.rel (%p228) target = $region40
      $region39: #{sepconv_pallas.1} parent=5 // pred_region
        // Predicated region
        $region41: #{sepconv_pallas.1} parent=39 // pred_check
          %p231 = pneg %p36
        $region42: #{sepconv_pallas.1} parent=39 // pred_check_branch
          %233 = sbr.rel (%p231) target = $region44
        $region43: #{sepconv_pallas.1} parent=39 // pred_region
          %p234 = scmp.lt.s32.totalorder %s16, 1
          %s235 = scalar_select %p234, %s16, 1
          %s236 = smul.addr %s235, 8
          %s237 = smul.addr %s236, 8
          %s238 = scalar_lea.vmem %s0, %s237
        $region44: #{sepconv_pallas.1} parent=39 // pred_fallthru
          _
      $region40: #{sepconv_pallas.1} parent=5 // pred_fallthru
        _
      %p239 = scmp.le.s32.totalorder 1, %s16
      %p240 = scmp.lt.s32.totalorder %s16, 3
      %p241 = pnand %p239, %p240
      %p242 = pneg %p241
      // Predicated region
      $region45: #{sepconv_pallas.1} parent=5 // pred_check
        _
      $region46: #{sepconv_pallas.1} parent=5 // pred_check_branch
        %244 = sbr.rel (%p241) target = $region48
      $region47: #{sepconv_pallas.1} parent=5 // pred_region
        %s245 = ssub.s32 %s16, 1
        %p246 = scmp.lt.s32.totalorder %s21, 1
        %s247 = scalar_select %p246, %s21, 1
        %s248 = smul.addr %s247, 8
        %s249 = smul.addr %s248, 8
        %s250 = scalar_lea.vmem %s0, %s249
        %p251 = pneg %p42
        %p252 = pneg %p39
        %p253 = pneg %p63
        %p254 = pneg %p60
        %p255 = pneg %p84
        %p256 = pneg %p81
        %p257 = pneg %p105
        %p258 = pneg %p102
        %p259 = pneg %p126
        %p260 = pneg %p123
        %p261 = pneg %p147
        %p262 = pneg %p144
        %p263 = pneg %p168
        %p264 = pneg %p165
        %p265 = pneg %p194
        %p266 = pneg %p191
        %s267 = sand.u32 %s181, 1
        %s268 = scalar_lea.sflag [#allocation5], %s267
        %s269 = sand.u32 %s181, 1
        %s270 = smul.addr %s269, 64
        %s271 = scalar_lea.vmem [#allocation4], %s270
        %p272 = scmp.lt.s32.totalorder %s21, 1
        %s273 = scalar_select %p272, %s21, 1
        %s274 = smul.addr %s273, 8
        %s275 = smul.addr %s274, 8
        %s276 = scalar_lea.vmem %s0, %s275
        %vm277 = vcmask 146432
        %278 = vst.msk [vmem:[#allocation2] sm:$0xff] %vm277, 0.0
        %279 = vst.msk [vmem:[#allocation2 + $0x8] sm:$0xff] %vm277, 0.0
        %vm280 = vcmask 140288
        %281 = vst.msk [vmem:[#allocation2 + $0x10] sm:$0x3] %vm280, 0.0
        %282 = vst.msk [vmem:[#allocation2 + $0x18] sm:$0xff] %vm277, 0.0
        %283 = vst.msk [vmem:[#allocation2 + $0x20] sm:$0xff] %vm277, 0.0
        %284 = vst.msk [vmem:[#allocation2 + $0x28] sm:$0x3] %vm280, 0.0
        %285 = vst.msk [vmem:[#allocation2 + $0x30] sm:$0xff] %vm277, 0.0
        %286 = vst.msk [vmem:[#allocation2 + $0x38] sm:$0xff] %vm277, 0.0
        %287 = vst.msk [vmem:[#allocation2 + $0x40] sm:$0x3] %vm280, 0.0
        %288 = vst.msk [vmem:[#allocation2 + $0x48] sm:$0xff] %vm277, 0.0
        %289 = vst.msk [vmem:[#allocation2 + $0x50] sm:$0xff] %vm277, 0.0
        %290 = vst.msk [vmem:[#allocation2 + $0x58] sm:$0x3] %vm280, 0.0
        %v291 = vld [vmem:[%s276] sm:$0xff]
        %v292 = vld [vmem:[%s276 + $0x8] sm:$0xff]
        %v293 = vld [vmem:[%s276 + $0x10] sm:$0xff]
        %v294 = vld [vmem:[%s276 + $0x18] sm:$0xff]
        %v295 = vld [vmem:[%s276 + $0x20] sm:$0xff]
        %v296 = vld [vmem:[%s276 + $0x28] sm:$0xff]
        %v297 = vld [vmem:[%s276 + $0x30] sm:$0xff]
        %v298 = vld [vmem:[%s276 + $0x38] sm:$0xff]
        %307 = vrot.lane.b32.xlu0 %v291, 1
        %v308 = vpop.permute.xlu0 %307
        %309 = vrot.lane.b32.xlu0 %v292, 1
        %v310 = vpop.permute.xlu0 %309
        %311 = vrot.lane.b32.xlu0 %v293, 1
        %v312 = vpop.permute.xlu0 %311
        %313 = vrot.lane.b32.xlu0 %v294, 1
        %v314 = vpop.permute.xlu0 %313
        %315 = vrot.lane.b32.xlu0 %v295, 1
        %v316 = vpop.permute.xlu0 %315
        %317 = vrot.lane.b32.xlu0 %v296, 1
        %v318 = vpop.permute.xlu0 %317
        %319 = vrot.lane.b32.xlu0 %v297, 1
        %v320 = vpop.permute.xlu0 %319
        %321 = vrot.lane.b32.xlu0 %v298, 1
        %v322 = vpop.permute.xlu0 %321
        %vm331 = vcmask 138248
        %332 = vst.msk [vmem:[#allocation2 + $0x1] sm:$0xff] %vm331, %v308
        %333 = vst.msk [vmem:[#allocation2 + $0x9] sm:$0xff] %vm331, %v310
        %334 = vst.msk [vmem:[#allocation2 + $0x19] sm:$0xff] %vm331, %v312
        %335 = vst.msk [vmem:[#allocation2 + $0x21] sm:$0xff] %vm331, %v314
        %336 = vst.msk [vmem:[#allocation2 + $0x31] sm:$0xff] %vm331, %v316
        %337 = vst.msk [vmem:[#allocation2 + $0x39] sm:$0xff] %vm331, %v318
        %338 = vst.msk [vmem:[#allocation2 + $0x49] sm:$0xff] %vm331, %v320
        %339 = vst.msk [vmem:[#allocation2 + $0x51] sm:$0xff] %vm331, %v322
        %v340 = vld [vmem:[#allocation2] sm:$0xff]
        %v341 = vld [vmem:[#allocation2 + $0x8] sm:$0xff]
        %v342 = vld [vmem:[#allocation2 + $0x18] sm:$0xff]
        %v343 = vld [vmem:[#allocation2 + $0x20] sm:$0xff]
        %v344 = vld [vmem:[#allocation2 + $0x30] sm:$0xff]
        %v345 = vld [vmem:[#allocation2 + $0x38] sm:$0xff]
        %v346 = vld [vmem:[#allocation2 + $0x48] sm:$0xff]
        %v347 = vld [vmem:[#allocation2 + $0x50] sm:$0xff]
        %v348 = vld [vmem:[%s1] sm:$0x1]
        %v349 = vld [vmem:[%s1 + $0x1] sm:$0x1]
        %v350 = vld [vmem:[%s1 + $0x2] sm:$0x1]
        %v351 = vld [vmem:[%s1 + $0x3] sm:$0x1]
        %v356 = vlaneseq
        %v357 = vshrl.u32 %v356, 7
        %v358 = vsub.s32 0, %v357
        %v359 = vrot.slane %v348, %v358
        %v360 = vlaneseq
        %v361 = vshrl.u32 %v360, 7
        %v362 = vsub.s32 0, %v361
        %v363 = vrot.slane %v349, %v362
        %v364 = vlaneseq
        %v365 = vshrl.u32 %v364, 7
        %v366 = vsub.s32 0, %v365
        %v367 = vrot.slane %v350, %v366
        %v368 = vlaneseq
        %v369 = vshrl.u32 %v368, 7
        %v370 = vsub.s32 0, %v369
        %v371 = vrot.slane %v351, %v370
        %372 = vset.pattern.permute.xlu0 0
        %373 = vperm.xlu0 %372, %v359
        %v374 = vpop.permute.xlu0 %373
        %376 = vset.pattern.permute.xlu0 0
        %377 = vperm.xlu0 %376, %v363
        %v378 = vpop.permute.xlu0 %377
        %380 = vset.pattern.permute.xlu0 0
        %381 = vperm.xlu0 %380, %v367
        %v382 = vpop.permute.xlu0 %381
        %384 = vset.pattern.permute.xlu0 0
        %385 = vperm.xlu0 %384, %v371
        %v386 = vpop.permute.xlu0 %385
        %v388 = vmul.f32 %v340, %v374
        %v389 = vmul.f32 %v341, %v374
        %v390 = vmul.f32 %v342, %v378
        %v391 = vmul.f32 %v343, %v378
        %v392 = vmul.f32 %v344, %v382
        %v393 = vmul.f32 %v345, %v382
        %v394 = vmul.f32 %v346, %v386
        %v395 = vmul.f32 %v347, %v386
        %v396 = vadd.f32 %v388, 0.0
        %v397 = vadd.f32 %v389, 0.0
        %v398 = vadd.f32 %v390, 0.0
        %v399 = vadd.f32 %v391, 0.0
        %v400 = vadd.f32 %v392, 0.0
        %v401 = vadd.f32 %v393, 0.0
        %v402 = vadd.f32 %v394, 0.0
        %v403 = vadd.f32 %v395, 0.0
        %s404 = scalar_lea.vmem %s1, 4
        %v405 = vld [vmem:[%s404] sm:$0x1]
        %v406 = vld [vmem:[%s404 + $0x1] sm:$0x1]
        %v407 = vld [vmem:[%s404 + $0x2] sm:$0x1]
        %v408 = vld [vmem:[%s404 + $0x3] sm:$0x1]
        %v413 = vlaneseq
        %v414 = vshrl.u32 %v413, 7
        %v415 = vsub.s32 0, %v414
        %v416 = vrot.slane %v405, %v415
        %v417 = vlaneseq
        %v418 = vshrl.u32 %v417, 7
        %v419 = vsub.s32 0, %v418
        %v420 = vrot.slane %v406, %v419
        %v421 = vlaneseq
        %v422 = vshrl.u32 %v421, 7
        %v423 = vsub.s32 0, %v422
        %v424 = vrot.slane %v407, %v423
        %v425 = vlaneseq
        %v426 = vshrl.u32 %v425, 7
        %v427 = vsub.s32 0, %v426
        %v428 = vrot.slane %v408, %v427
        %429 = vset.pattern.permute.xlu0 0
        %430 = vperm.xlu0 %429, %v416
        %v431 = vpop.permute.xlu0 %430
        %433 = vset.pattern.permute.xlu0 0
        %434 = vperm.xlu0 %433, %v420
        %v435 = vpop.permute.xlu0 %434
        %437 = vset.pattern.permute.xlu0 0
        %438 = vperm.xlu0 %437, %v424
        %v439 = vpop.permute.xlu0 %438
        %441 = vset.pattern.permute.xlu0 0
        %442 = vperm.xlu0 %441, %v428
        %v443 = vpop.permute.xlu0 %442
        %v445 = vmul.f32 %v340, %v431
        %v446 = vmul.f32 %v341, %v431
        %v447 = vmul.f32 %v342, %v435
        %v448 = vmul.f32 %v343, %v435
        %v449 = vmul.f32 %v344, %v439
        %v450 = vmul.f32 %v345, %v439
        %v451 = vmul.f32 %v346, %v443
        %v452 = vmul.f32 %v347, %v443
        %461 = vrot.lane.b32.xlu0 %v445, 127
        %v462 = vpop.permute.xlu0 %461
        %463 = vrot.lane.b32.xlu0 %v446, 127
        %v464 = vpop.permute.xlu0 %463
        %465 = vrot.lane.b32.xlu0 %v447, 127
        %v466 = vpop.permute.xlu0 %465
        %467 = vrot.lane.b32.xlu0 %v448, 127
        %v468 = vpop.permute.xlu0 %467
        %469 = vrot.lane.b32.xlu0 %v449, 127
        %v470 = vpop.permute.xlu0 %469
        %471 = vrot.lane.b32.xlu0 %v450, 127
        %v472 = vpop.permute.xlu0 %471
        %473 = vrot.lane.b32.xlu0 %v451, 127
        %v474 = vpop.permute.xlu0 %473
        %475 = vrot.lane.b32.xlu0 %v452, 127
        %v476 = vpop.permute.xlu0 %475
        %v485 = vadd.f32 %v396, %v462
        %v486 = vadd.f32 %v397, %v464
        %v487 = vadd.f32 %v398, %v466
        %v488 = vadd.f32 %v399, %v468
        %v489 = vadd.f32 %v400, %v470
        %v490 = vadd.f32 %v401, %v472
        %v491 = vadd.f32 %v402, %v474
        %v492 = vadd.f32 %v403, %v476
        %s493 = scalar_lea.vmem %s1, 8
        %v494 = vld [vmem:[%s493] sm:$0x1]
        %v495 = vld [vmem:[%s493 + $0x1] sm:$0x1]
        %v496 = vld [vmem:[%s493 + $0x2] sm:$0x1]
        %v497 = vld [vmem:[%s493 + $0x3] sm:$0x1]
        %v502 = vlaneseq
        %v503 = vshrl.u32 %v502, 7
        %v504 = vsub.s32 0, %v503
        %v505 = vrot.slane %v494, %v504
        %v506 = vlaneseq
        %v507 = vshrl.u32 %v506, 7
        %v508 = vsub.s32 0, %v507
        %v509 = vrot.slane %v495, %v508
        %v510 = vlaneseq
        %v511 = vshrl.u32 %v510, 7
        %v512 = vsub.s32 0, %v511
        %v513 = vrot.slane %v496, %v512
        %v514 = vlaneseq
        %v515 = vshrl.u32 %v514, 7
        %v516 = vsub.s32 0, %v515
        %v517 = vrot.slane %v497, %v516
        %518 = vset.pattern.permute.xlu0 0
        %519 = vperm.xlu0 %518, %v505
        %v520 = vpop.permute.xlu0 %519
        %522 = vset.pattern.permute.xlu0 0
        %523 = vperm.xlu0 %522, %v509
        %v524 = vpop.permute.xlu0 %523
        %526 = vset.pattern.permute.xlu0 0
        %527 = vperm.xlu0 %526, %v513
        %v528 = vpop.permute.xlu0 %527
        %530 = vset.pattern.permute.xlu0 0
        %531 = vperm.xlu0 %530, %v517
        %v532 = vpop.permute.xlu0 %531
        %v534 = vmul.f32 %v340, %v520
        %v535 = vmul.f32 %v341, %v520
        %v536 = vmul.f32 %v342, %v524
        %v537 = vmul.f32 %v343, %v524
        %v538 = vmul.f32 %v344, %v528
        %v539 = vmul.f32 %v345, %v528
        %v540 = vmul.f32 %v346, %v532
        %v541 = vmul.f32 %v347, %v532
        %550 = vrot.lane.b32.xlu0 %v534, 126
        %v551 = vpop.permute.xlu0 %550
        %552 = vrot.lane.b32.xlu0 %v535, 126
        %v553 = vpop.permute.xlu0 %552
        %554 = vrot.lane.b32.xlu0 %v536, 126
        %v555 = vpop.permute.xlu0 %554
        %556 = vrot.lane.b32.xlu0 %v537, 126
        %v557 = vpop.permute.xlu0 %556
        %558 = vrot.lane.b32.xlu0 %v538, 126
        %v559 = vpop.permute.xlu0 %558
        %560 = vrot.lane.b32.xlu0 %v539, 126
        %v561 = vpop.permute.xlu0 %560
        %562 = vrot.lane.b32.xlu0 %v540, 126
        %v563 = vpop.permute.xlu0 %562
        %564 = vrot.lane.b32.xlu0 %v541, 126
        %v565 = vpop.permute.xlu0 %564
        %v574 = vadd.f32 %v485, %v551
        %v575 = vadd.f32 %v486, %v553
        %v576 = vadd.f32 %v487, %v555
        %v577 = vadd.f32 %v488, %v557
        %v578 = vadd.f32 %v489, %v559
        %v579 = vadd.f32 %v490, %v561
        %v580 = vadd.f32 %v491, %v563
        %v581 = vadd.f32 %v492, %v565
        %v582 = vld [vmem:[#allocation2 + $0x1] sm:$0xff]
        %v583 = vld [vmem:[#allocation2 + $0x9] sm:$0xff]
        %v584 = vld [vmem:[#allocation2 + $0x19] sm:$0xff]
        %v585 = vld [vmem:[#allocation2 + $0x21] sm:$0xff]
        %v586 = vld [vmem:[#allocation2 + $0x31] sm:$0xff]
        %v587 = vld [vmem:[#allocation2 + $0x39] sm:$0xff]
        %v588 = vld [vmem:[#allocation2 + $0x49] sm:$0xff]
        %v589 = vld [vmem:[#allocation2 + $0x51] sm:$0xff]
        %s590 = scalar_lea.vmem %s1, 12
        %v591 = vld [vmem:[%s590] sm:$0x1]
        %v592 = vld [vmem:[%s590 + $0x1] sm:$0x1]
        %v593 = vld [vmem:[%s590 + $0x2] sm:$0x1]
        %v594 = vld [vmem:[%s590 + $0x3] sm:$0x1]
        %v599 = vlaneseq
        %v600 = vshrl.u32 %v599, 7
        %v601 = vsub.s32 0, %v600
        %v602 = vrot.slane %v591, %v601
        %v603 = vlaneseq
        %v604 = vshrl.u32 %v603, 7
        %v605 = vsub.s32 0, %v604
        %v606 = vrot.slane %v592, %v605
        %v607 = vlaneseq
        %v608 = vshrl.u32 %v607, 7
        %v609 = vsub.s32 0, %v608
        %v610 = vrot.slane %v593, %v609
        %v611 = vlaneseq
        %v612 = vshrl.u32 %v611, 7
        %v613 = vsub.s32 0, %v612
        %v614 = vrot.slane %v594, %v613
        %615 = vset.pattern.permute.xlu0 0
        %616 = vperm.xlu0 %615, %v602
        %v617 = vpop.permute.xlu0 %616
        %619 = vset.pattern.permute.xlu0 0
        %620 = vperm.xlu0 %619, %v606
        %v621 = vpop.permute.xlu0 %620
        %623 = vset.pattern.permute.xlu0 0
        %624 = vperm.xlu0 %623, %v610
        %v625 = vpop.permute.xlu0 %624
        %627 = vset.pattern.permute.xlu0 0
        %628 = vperm.xlu0 %627, %v614
        %v629 = vpop.permute.xlu0 %628
        %v631 = vmul.f32 %v582, %v617
        %v632 = vmul.f32 %v583, %v617
        %v633 = vmul.f32 %v584, %v621
        %v634 = vmul.f32 %v585, %v621
        %v635 = vmul.f32 %v586, %v625
        %v636 = vmul.f32 %v587, %v625
        %v637 = vmul.f32 %v588, %v629
        %v638 = vmul.f32 %v589, %v629
        %v639 = vadd.f32 %v574, %v631
        %v640 = vadd.f32 %v575, %v632
        %v641 = vadd.f32 %v576, %v633
        %v642 = vadd.f32 %v577, %v634
        %v643 = vadd.f32 %v578, %v635
        %v644 = vadd.f32 %v579, %v636
        %v645 = vadd.f32 %v580, %v637
        %v646 = vadd.f32 %v581, %v638
        %s647 = scalar_lea.vmem %s1, 16
        %v648 = vld [vmem:[%s647] sm:$0x1]
        %v649 = vld [vmem:[%s647 + $0x1] sm:$0x1]
        %v650 = vld [vmem:[%s647 + $0x2] sm:$0x1]
        %v651 = vld [vmem:[%s647 + $0x3] sm:$0x1]
        %v656 = vlaneseq
        %v657 = vshrl.u32 %v656, 7
        %v658 = vsub.s32 0, %v657
        %v659 = vrot.slane %v648, %v658
        %v660 = vlaneseq
        %v661 = vshrl.u32 %v660, 7
        %v662 = vsub.s32 0, %v661
        %v663 = vrot.slane %v649, %v662
        %v664 = vlaneseq
        %v665 = vshrl.u32 %v664, 7
        %v666 = vsub.s32 0, %v665
        %v667 = vrot.slane %v650, %v666
        %v668 = vlaneseq
        %v669 = vshrl.u32 %v668, 7
        %v670 = vsub.s32 0, %v669
        %v671 = vrot.slane %v651, %v670
        %672 = vset.pattern.permute.xlu0 0
        %673 = vperm.xlu0 %672, %v659
        %v674 = vpop.permute.xlu0 %673
        %676 = vset.pattern.permute.xlu0 0
        %677 = vperm.xlu0 %676, %v663
        %v678 = vpop.permute.xlu0 %677
        %680 = vset.pattern.permute.xlu0 0
        %681 = vperm.xlu0 %680, %v667
        %v682 = vpop.permute.xlu0 %681
        %684 = vset.pattern.permute.xlu0 0
        %685 = vperm.xlu0 %684, %v671
        %v686 = vpop.permute.xlu0 %685
        %v688 = vmul.f32 %v582, %v674
        %v689 = vmul.f32 %v583, %v674
        %v690 = vmul.f32 %v584, %v678
        %v691 = vmul.f32 %v585, %v678
        %v692 = vmul.f32 %v586, %v682
        %v693 = vmul.f32 %v587, %v682
        %v694 = vmul.f32 %v588, %v686
        %v695 = vmul.f32 %v589, %v686
        %704 = vrot.lane.b32.xlu0 %v688, 127
        %v705 = vpop.permute.xlu0 %704
        %706 = vrot.lane.b32.xlu0 %v689, 127
        %v707 = vpop.permute.xlu0 %706
        %708 = vrot.lane.b32.xlu0 %v690, 127
        %v709 = vpop.permute.xlu0 %708
        %710 = vrot.lane.b32.xlu0 %v691, 127
        %v711 = vpop.permute.xlu0 %710
        %712 = vrot.lane.b32.xlu0 %v692, 127
        %v713 = vpop.permute.xlu0 %712
        %714 = vrot.lane.b32.xlu0 %v693, 127
        %v715 = vpop.permute.xlu0 %714
        %716 = vrot.lane.b32.xlu0 %v694, 127
        %v717 = vpop.permute.xlu0 %716
        %718 = vrot.lane.b32.xlu0 %v695, 127
        %v719 = vpop.permute.xlu0 %718
        %v728 = vadd.f32 %v639, %v705
        %v729 = vadd.f32 %v640, %v707
        %v730 = vadd.f32 %v641, %v709
        %v731 = vadd.f32 %v642, %v711
        %v732 = vadd.f32 %v643, %v713
        %v733 = vadd.f32 %v644, %v715
        %v734 = vadd.f32 %v645, %v717
        %v735 = vadd.f32 %v646, %v719
        %s736 = scalar_lea.vmem %s1, 20
        %v737 = vld [vmem:[%s736] sm:$0x1]
        %v738 = vld [vmem:[%s736 + $0x1] sm:$0x1]
        %v739 = vld [vmem:[%s736 + $0x2] sm:$0x1]
        %v740 = vld [vmem:[%s736 + $0x3] sm:$0x1]
        %v745 = vlaneseq
        %v746 = vshrl.u32 %v745, 7
        %v747 = vsub.s32 0, %v746
        %v748 = vrot.slane %v737, %v747
        %v749 = vlaneseq
        %v750 = vshrl.u32 %v749, 7
        %v751 = vsub.s32 0, %v750
        %v752 = vrot.slane %v738, %v751
        %v753 = vlaneseq
        %v754 = vshrl.u32 %v753, 7
        %v755 = vsub.s32 0, %v754
        %v756 = vrot.slane %v739, %v755
        %v757 = vlaneseq
        %v758 = vshrl.u32 %v757, 7
        %v759 = vsub.s32 0, %v758
        %v760 = vrot.slane %v740, %v759
        %761 = vset.pattern.permute.xlu0 0
        %762 = vperm.xlu0 %761, %v748
        %v763 = vpop.permute.xlu0 %762
        %765 = vset.pattern.permute.xlu0 0
        %766 = vperm.xlu0 %765, %v752
        %v767 = vpop.permute.xlu0 %766
        %769 = vset.pattern.permute.xlu0 0
        %770 = vperm.xlu0 %769, %v756
        %v771 = vpop.permute.xlu0 %770
        %773 = vset.pattern.permute.xlu0 0
        %774 = vperm.xlu0 %773, %v760
        %v775 = vpop.permute.xlu0 %774
        %v777 = vmul.f32 %v582, %v763
        %v778 = vmul.f32 %v583, %v763
        %v779 = vmul.f32 %v584, %v767
        %v780 = vmul.f32 %v585, %v767
        %v781 = vmul.f32 %v586, %v771
        %v782 = vmul.f32 %v587, %v771
        %v783 = vmul.f32 %v588, %v775
        %v784 = vmul.f32 %v589, %v775
        %793 = vrot.lane.b32.xlu0 %v777, 126
        %v794 = vpop.permute.xlu0 %793
        %795 = vrot.lane.b32.xlu0 %v778, 126
        %v796 = vpop.permute.xlu0 %795
        %797 = vrot.lane.b32.xlu0 %v779, 126
        %v798 = vpop.permute.xlu0 %797
        %799 = vrot.lane.b32.xlu0 %v780, 126
        %v800 = vpop.permute.xlu0 %799
        %801 = vrot.lane.b32.xlu0 %v781, 126
        %v802 = vpop.permute.xlu0 %801
        %803 = vrot.lane.b32.xlu0 %v782, 126
        %v804 = vpop.permute.xlu0 %803
        %805 = vrot.lane.b32.xlu0 %v783, 126
        %v806 = vpop.permute.xlu0 %805
        %807 = vrot.lane.b32.xlu0 %v784, 126
        %v808 = vpop.permute.xlu0 %807
        %v817 = vadd.f32 %v728, %v794
        %v818 = vadd.f32 %v729, %v796
        %v819 = vadd.f32 %v730, %v798
        %v820 = vadd.f32 %v731, %v800
        %v821 = vadd.f32 %v732, %v802
        %v822 = vadd.f32 %v733, %v804
        %v823 = vadd.f32 %v734, %v806
        %v824 = vadd.f32 %v735, %v808
        %v825 = vld [vmem:[#allocation2 + $0x2] sm:$0xff]
        %v826 = vld [vmem:[#allocation2 + $0xa] sm:$0xff]
        %v827 = vld [vmem:[#allocation2 + $0x1a] sm:$0xff]
        %v828 = vld [vmem:[#allocation2 + $0x22] sm:$0xff]
        %v829 = vld [vmem:[#allocation2 + $0x32] sm:$0xff]
        %v830 = vld [vmem:[#allocation2 + $0x3a] sm:$0xff]
        %v831 = vld [vmem:[#allocation2 + $0x4a] sm:$0xff]
        %v832 = vld [vmem:[#allocation2 + $0x52] sm:$0xff]
        %s833 = scalar_lea.vmem %s1, 24
        %v834 = vld [vmem:[%s833] sm:$0x1]
        %v835 = vld [vmem:[%s833 + $0x1] sm:$0x1]
        %v836 = vld [vmem:[%s833 + $0x2] sm:$0x1]
        %v837 = vld [vmem:[%s833 + $0x3] sm:$0x1]
        %v842 = vlaneseq
        %v843 = vshrl.u32 %v842, 7
        %v844 = vsub.s32 0, %v843
        %v845 = vrot.slane %v834, %v844
        %v846 = vlaneseq
        %v847 = vshrl.u32 %v846, 7
        %v848 = vsub.s32 0, %v847
        %v849 = vrot.slane %v835, %v848
        %v850 = vlaneseq
        %v851 = vshrl.u32 %v850, 7
        %v852 = vsub.s32 0, %v851
        %v853 = vrot.slane %v836, %v852
        %v854 = vlaneseq
        %v855 = vshrl.u32 %v854, 7
        %v856 = vsub.s32 0, %v855
        %v857 = vrot.slane %v837, %v856
        %858 = vset.pattern.permute.xlu0 0
        %859 = vperm.xlu0 %858, %v845
        %v860 = vpop.permute.xlu0 %859
        %862 = vset.pattern.permute.xlu0 0
        %863 = vperm.xlu0 %862, %v849
        %v864 = vpop.permute.xlu0 %863
        %866 = vset.pattern.permute.xlu0 0
        %867 = vperm.xlu0 %866, %v853
        %v868 = vpop.permute.xlu0 %867
        %870 = vset.pattern.permute.xlu0 0
        %871 = vperm.xlu0 %870, %v857
        %v872 = vpop.permute.xlu0 %871
        %v874 = vmul.f32 %v825, %v860
        %v875 = vmul.f32 %v826, %v860
        %v876 = vmul.f32 %v827, %v864
        %v877 = vmul.f32 %v828, %v864
        %v878 = vmul.f32 %v829, %v868
        %v879 = vmul.f32 %v830, %v868
        %v880 = vmul.f32 %v831, %v872
        %v881 = vmul.f32 %v832, %v872
        %v882 = vadd.f32 %v817, %v874
        %v883 = vadd.f32 %v818, %v875
        %v884 = vadd.f32 %v819, %v876
        %v885 = vadd.f32 %v820, %v877
        %v886 = vadd.f32 %v821, %v878
        %v887 = vadd.f32 %v822, %v879
        %v888 = vadd.f32 %v823, %v880
        %v889 = vadd.f32 %v824, %v881
        %s890 = scalar_lea.vmem %s1, 28
        %v891 = vld [vmem:[%s890] sm:$0x1]
        %v892 = vld [vmem:[%s890 + $0x1] sm:$0x1]
        %v893 = vld [vmem:[%s890 + $0x2] sm:$0x1]
        %v894 = vld [vmem:[%s890 + $0x3] sm:$0x1]
        %v899 = vlaneseq
        %v900 = vshrl.u32 %v899, 7
        %v901 = vsub.s32 0, %v900
        %v902 = vrot.slane %v891, %v901
        %v903 = vlaneseq
        %v904 = vshrl.u32 %v903, 7
        %v905 = vsub.s32 0, %v904
        %v906 = vrot.slane %v892, %v905
        %v907 = vlaneseq
        %v908 = vshrl.u32 %v907, 7
        %v909 = vsub.s32 0, %v908
        %v910 = vrot.slane %v893, %v909
        %v911 = vlaneseq
        %v912 = vshrl.u32 %v911, 7
        %v913 = vsub.s32 0, %v912
        %v914 = vrot.slane %v894, %v913
        %915 = vset.pattern.permute.xlu0 0
        %916 = vperm.xlu0 %915, %v902
        %v917 = vpop.permute.xlu0 %916
        %919 = vset.pattern.permute.xlu0 0
        %920 = vperm.xlu0 %919, %v906
        %v921 = vpop.permute.xlu0 %920
        %923 = vset.pattern.permute.xlu0 0
        %924 = vperm.xlu0 %923, %v910
        %v925 = vpop.permute.xlu0 %924
        %927 = vset.pattern.permute.xlu0 0
        %928 = vperm.xlu0 %927, %v914
        %v929 = vpop.permute.xlu0 %928
        %v931 = vmul.f32 %v825, %v917
        %v932 = vmul.f32 %v826, %v917
        %v933 = vmul.f32 %v827, %v921
        %v934 = vmul.f32 %v828, %v921
        %v935 = vmul.f32 %v829, %v925
        %v936 = vmul.f32 %v830, %v925
        %v937 = vmul.f32 %v831, %v929
        %v938 = vmul.f32 %v832, %v929
        %947 = vrot.lane.b32.xlu0 %v931, 127
        %v948 = vpop.permute.xlu0 %947
        %949 = vrot.lane.b32.xlu0 %v932, 127
        %v950 = vpop.permute.xlu0 %949
        %951 = vrot.lane.b32.xlu0 %v933, 127
        %v952 = vpop.permute.xlu0 %951
        %953 = vrot.lane.b32.xlu0 %v934, 127
        %v954 = vpop.permute.xlu0 %953
        %955 = vrot.lane.b32.xlu0 %v935, 127
        %v956 = vpop.permute.xlu0 %955
        %957 = vrot.lane.b32.xlu0 %v936, 127
        %v958 = vpop.permute.xlu0 %957
        %959 = vrot.lane.b32.xlu0 %v937, 127
        %v960 = vpop.permute.xlu0 %959
        %961 = vrot.lane.b32.xlu0 %v938, 127
        %v962 = vpop.permute.xlu0 %961
        %v971 = vadd.f32 %v882, %v948
        %v972 = vadd.f32 %v883, %v950
        %v973 = vadd.f32 %v884, %v952
        %v974 = vadd.f32 %v885, %v954
        %v975 = vadd.f32 %v886, %v956
        %v976 = vadd.f32 %v887, %v958
        %v977 = vadd.f32 %v888, %v960
        %v978 = vadd.f32 %v889, %v962
        %s979 = scalar_lea.vmem %s1, 32
        %v980 = vld [vmem:[%s979] sm:$0x1]
        %v981 = vld [vmem:[%s979 + $0x1] sm:$0x1]
        %v982 = vld [vmem:[%s979 + $0x2] sm:$0x1]
        %v983 = vld [vmem:[%s979 + $0x3] sm:$0x1]
        %v988 = vlaneseq
        %v989 = vshrl.u32 %v988, 7
        %v990 = vsub.s32 0, %v989
        %v991 = vrot.slane %v980, %v990
        %v992 = vlaneseq
        %v993 = vshrl.u32 %v992, 7
        %v994 = vsub.s32 0, %v993
        %v995 = vrot.slane %v981, %v994
        %v996 = vlaneseq
        %v997 = vshrl.u32 %v996, 7
        %v998 = vsub.s32 0, %v997
        %v999 = vrot.slane %v982, %v998
        %v1000 = vlaneseq
        %v1001 = vshrl.u32 %v1000, 7
        %v1002 = vsub.s32 0, %v1001
        %v1003 = vrot.slane %v983, %v1002
        %1004 = vset.pattern.permute.xlu0 0
        %1005 = vperm.xlu0 %1004, %v991
        %v1006 = vpop.permute.xlu0 %1005
        %1008 = vset.pattern.permute.xlu0 0
        %1009 = vperm.xlu0 %1008, %v995
        %v1010 = vpop.permute.xlu0 %1009
        %1012 = vset.pattern.permute.xlu0 0
        %1013 = vperm.xlu0 %1012, %v999
        %v1014 = vpop.permute.xlu0 %1013
        %1016 = vset.pattern.permute.xlu0 0
        %1017 = vperm.xlu0 %1016, %v1003
        %v1018 = vpop.permute.xlu0 %1017
        %v1020 = vmul.f32 %v825, %v1006
        %v1021 = vmul.f32 %v826, %v1006
        %v1022 = vmul.f32 %v827, %v1010
        %v1023 = vmul.f32 %v828, %v1010
        %v1024 = vmul.f32 %v829, %v1014
        %v1025 = vmul.f32 %v830, %v1014
        %v1026 = vmul.f32 %v831, %v1018
        %v1027 = vmul.f32 %v832, %v1018
        %1036 = vrot.lane.b32.xlu0 %v1020, 126
        %v1037 = vpop.permute.xlu0 %1036
        %1038 = vrot.lane.b32.xlu0 %v1021, 126
        %v1039 = vpop.permute.xlu0 %1038
        %1040 = vrot.lane.b32.xlu0 %v1022, 126
        %v1041 = vpop.permute.xlu0 %1040
        %1042 = vrot.lane.b32.xlu0 %v1023, 126
        %v1043 = vpop.permute.xlu0 %1042
        %1044 = vrot.lane.b32.xlu0 %v1024, 126
        %v1045 = vpop.permute.xlu0 %1044
        %1046 = vrot.lane.b32.xlu0 %v1025, 126
        %v1047 = vpop.permute.xlu0 %1046
        %1048 = vrot.lane.b32.xlu0 %v1026, 126
        %v1049 = vpop.permute.xlu0 %1048
        %1050 = vrot.lane.b32.xlu0 %v1027, 126
        %v1051 = vpop.permute.xlu0 %1050
        %v1060 = vadd.f32 %v971, %v1037
        %v1061 = vadd.f32 %v972, %v1039
        %v1062 = vadd.f32 %v973, %v1041
        %v1063 = vadd.f32 %v974, %v1043
        %v1064 = vadd.f32 %v975, %v1045
        %v1065 = vadd.f32 %v976, %v1047
        %v1066 = vadd.f32 %v977, %v1049
        %v1067 = vadd.f32 %v978, %v1051
        %v1068 = vld [vmem:[%s2] sm:$0x1]
        %v1069 = vld [vmem:[%s2 + $0x1] sm:$0x1]
        %v1070 = vld [vmem:[%s2 + $0x2] sm:$0x1]
        %v1071 = vld [vmem:[%s2 + $0x3] sm:$0x1]
        %v1076 = vlaneseq
        %v1077 = vshrl.u32 %v1076, 7
        %v1078 = vsub.s32 0, %v1077
        %v1079 = vrot.slane %v1068, %v1078
        %v1080 = vlaneseq
        %v1081 = vshrl.u32 %v1080, 7
        %v1082 = vsub.s32 0, %v1081
        %v1083 = vrot.slane %v1069, %v1082
        %v1084 = vlaneseq
        %v1085 = vshrl.u32 %v1084, 7
        %v1086 = vsub.s32 0, %v1085
        %v1087 = vrot.slane %v1070, %v1086
        %v1088 = vlaneseq
        %v1089 = vshrl.u32 %v1088, 7
        %v1090 = vsub.s32 0, %v1089
        %v1091 = vrot.slane %v1071, %v1090
        %1092 = vset.pattern.permute.xlu0 0
        %1093 = vperm.xlu0 %1092, %v1079
        %v1094 = vpop.permute.xlu0 %1093
        %1096 = vset.pattern.permute.xlu0 0
        %1097 = vperm.xlu0 %1096, %v1083
        %v1098 = vpop.permute.xlu0 %1097
        %1100 = vset.pattern.permute.xlu0 0
        %1101 = vperm.xlu0 %1100, %v1087
        %v1102 = vpop.permute.xlu0 %1101
        %1104 = vset.pattern.permute.xlu0 0
        %1105 = vperm.xlu0 %1104, %v1091
        %v1106 = vpop.permute.xlu0 %1105
        %v1108 = vmul.f32 %v1094, %v1060
        %v1109 = vmul.f32 %v1094, %v1061
        %v1110 = vmul.f32 %v1098, %v1060
        %v1111 = vmul.f32 %v1098, %v1061
        %v1112 = vmul.f32 %v1102, %v1060
        %v1113 = vmul.f32 %v1102, %v1061
        %v1114 = vmul.f32 %v1106, %v1060
        %v1115 = vmul.f32 %v1106, %v1061
        %v1116 = vadd.f32 %v1108, 0.0
        %v1117 = vadd.f32 %v1109, 0.0
        %v1118 = vadd.f32 %v1110, 0.0
        %v1119 = vadd.f32 %v1111, 0.0
        %v1120 = vadd.f32 %v1112, 0.0
        %v1121 = vadd.f32 %v1113, 0.0
        %v1122 = vadd.f32 %v1114, 0.0
        %v1123 = vadd.f32 %v1115, 0.0
        %s1124 = scalar_lea.vmem %s2, 4
        %v1125 = vld [vmem:[%s1124] sm:$0x1]
        %v1126 = vld [vmem:[%s1124 + $0x1] sm:$0x1]
        %v1127 = vld [vmem:[%s1124 + $0x2] sm:$0x1]
        %v1128 = vld [vmem:[%s1124 + $0x3] sm:$0x1]
        %v1133 = vlaneseq
        %v1134 = vshrl.u32 %v1133, 7
        %v1135 = vsub.s32 0, %v1134
        %v1136 = vrot.slane %v1125, %v1135
        %v1137 = vlaneseq
        %v1138 = vshrl.u32 %v1137, 7
        %v1139 = vsub.s32 0, %v1138
        %v1140 = vrot.slane %v1126, %v1139
        %v1141 = vlaneseq
        %v1142 = vshrl.u32 %v1141, 7
        %v1143 = vsub.s32 0, %v1142
        %v1144 = vrot.slane %v1127, %v1143
        %v1145 = vlaneseq
        %v1146 = vshrl.u32 %v1145, 7
        %v1147 = vsub.s32 0, %v1146
        %v1148 = vrot.slane %v1128, %v1147
        %1149 = vset.pattern.permute.xlu0 0
        %1150 = vperm.xlu0 %1149, %v1136
        %v1151 = vpop.permute.xlu0 %1150
        %1153 = vset.pattern.permute.xlu0 0
        %1154 = vperm.xlu0 %1153, %v1140
        %v1155 = vpop.permute.xlu0 %1154
        %1157 = vset.pattern.permute.xlu0 0
        %1158 = vperm.xlu0 %1157, %v1144
        %v1159 = vpop.permute.xlu0 %1158
        %1161 = vset.pattern.permute.xlu0 0
        %1162 = vperm.xlu0 %1161, %v1148
        %v1163 = vpop.permute.xlu0 %1162
        %v1165 = vmul.f32 %v1151, %v1062
        %v1166 = vmul.f32 %v1151, %v1063
        %v1167 = vmul.f32 %v1155, %v1062
        %v1168 = vmul.f32 %v1155, %v1063
        %v1169 = vmul.f32 %v1159, %v1062
        %v1170 = vmul.f32 %v1159, %v1063
        %v1171 = vmul.f32 %v1163, %v1062
        %v1172 = vmul.f32 %v1163, %v1063
        %v1173 = vadd.f32 %v1116, %v1165
        %v1174 = vadd.f32 %v1117, %v1166
        %v1175 = vadd.f32 %v1118, %v1167
        %v1176 = vadd.f32 %v1119, %v1168
        %v1177 = vadd.f32 %v1120, %v1169
        %v1178 = vadd.f32 %v1121, %v1170
        %v1179 = vadd.f32 %v1122, %v1171
        %v1180 = vadd.f32 %v1123, %v1172
        %s1181 = scalar_lea.vmem %s2, 8
        %v1182 = vld [vmem:[%s1181] sm:$0x1]
        %v1183 = vld [vmem:[%s1181 + $0x1] sm:$0x1]
        %v1184 = vld [vmem:[%s1181 + $0x2] sm:$0x1]
        %v1185 = vld [vmem:[%s1181 + $0x3] sm:$0x1]
        %v1190 = vlaneseq
        %v1191 = vshrl.u32 %v1190, 7
        %v1192 = vsub.s32 0, %v1191
        %v1193 = vrot.slane %v1182, %v1192
        %v1194 = vlaneseq
        %v1195 = vshrl.u32 %v1194, 7
        %v1196 = vsub.s32 0, %v1195
        %v1197 = vrot.slane %v1183, %v1196
        %v1198 = vlaneseq
        %v1199 = vshrl.u32 %v1198, 7
        %v1200 = vsub.s32 0, %v1199
        %v1201 = vrot.slane %v1184, %v1200
        %v1202 = vlaneseq
        %v1203 = vshrl.u32 %v1202, 7
        %v1204 = vsub.s32 0, %v1203
        %v1205 = vrot.slane %v1185, %v1204
        %1206 = vset.pattern.permute.xlu0 0
        %1207 = vperm.xlu0 %1206, %v1193
        %v1208 = vpop.permute.xlu0 %1207
        %1210 = vset.pattern.permute.xlu0 0
        %1211 = vperm.xlu0 %1210, %v1197
        %v1212 = vpop.permute.xlu0 %1211
        %1214 = vset.pattern.permute.xlu0 0
        %1215 = vperm.xlu0 %1214, %v1201
        %v1216 = vpop.permute.xlu0 %1215
        %1218 = vset.pattern.permute.xlu0 0
        %1219 = vperm.xlu0 %1218, %v1205
        %v1220 = vpop.permute.xlu0 %1219
        %v1222 = vmul.f32 %v1208, %v1064
        %v1223 = vmul.f32 %v1208, %v1065
        %v1224 = vmul.f32 %v1212, %v1064
        %v1225 = vmul.f32 %v1212, %v1065
        %v1226 = vmul.f32 %v1216, %v1064
        %v1227 = vmul.f32 %v1216, %v1065
        %v1228 = vmul.f32 %v1220, %v1064
        %v1229 = vmul.f32 %v1220, %v1065
        %v1230 = vadd.f32 %v1173, %v1222
        %v1231 = vadd.f32 %v1174, %v1223
        %v1232 = vadd.f32 %v1175, %v1224
        %v1233 = vadd.f32 %v1176, %v1225
        %v1234 = vadd.f32 %v1177, %v1226
        %v1235 = vadd.f32 %v1178, %v1227
        %v1236 = vadd.f32 %v1179, %v1228
        %v1237 = vadd.f32 %v1180, %v1229
        %s1238 = scalar_lea.vmem %s2, 12
        %v1239 = vld [vmem:[%s1238] sm:$0x1]
        %v1240 = vld [vmem:[%s1238 + $0x1] sm:$0x1]
        %v1241 = vld [vmem:[%s1238 + $0x2] sm:$0x1]
        %v1242 = vld [vmem:[%s1238 + $0x3] sm:$0x1]
        %v1247 = vlaneseq
        %v1248 = vshrl.u32 %v1247, 7
        %v1249 = vsub.s32 0, %v1248
        %v1250 = vrot.slane %v1239, %v1249
        %v1251 = vlaneseq
        %v1252 = vshrl.u32 %v1251, 7
        %v1253 = vsub.s32 0, %v1252
        %v1254 = vrot.slane %v1240, %v1253
        %v1255 = vlaneseq
        %v1256 = vshrl.u32 %v1255, 7
        %v1257 = vsub.s32 0, %v1256
        %v1258 = vrot.slane %v1241, %v1257
        %v1259 = vlaneseq
        %v1260 = vshrl.u32 %v1259, 7
        %v1261 = vsub.s32 0, %v1260
        %v1262 = vrot.slane %v1242, %v1261
        %1263 = vset.pattern.permute.xlu0 0
        %1264 = vperm.xlu0 %1263, %v1250
        %v1265 = vpop.permute.xlu0 %1264
        %1267 = vset.pattern.permute.xlu0 0
        %1268 = vperm.xlu0 %1267, %v1254
        %v1269 = vpop.permute.xlu0 %1268
        %1271 = vset.pattern.permute.xlu0 0
        %1272 = vperm.xlu0 %1271, %v1258
        %v1273 = vpop.permute.xlu0 %1272
        %1275 = vset.pattern.permute.xlu0 0
        %1276 = vperm.xlu0 %1275, %v1262
        %v1277 = vpop.permute.xlu0 %1276
        %v1279 = vmul.f32 %v1265, %v1066
        %v1280 = vmul.f32 %v1265, %v1067
        %v1281 = vmul.f32 %v1269, %v1066
        %v1282 = vmul.f32 %v1269, %v1067
        %v1283 = vmul.f32 %v1273, %v1066
        %v1284 = vmul.f32 %v1273, %v1067
        %v1285 = vmul.f32 %v1277, %v1066
        %v1286 = vmul.f32 %v1277, %v1067
        %v1287 = vadd.f32 %v1230, %v1279
        %v1288 = vadd.f32 %v1231, %v1280
        %v1289 = vadd.f32 %v1232, %v1281
        %v1290 = vadd.f32 %v1233, %v1282
        %v1291 = vadd.f32 %v1234, %v1283
        %v1292 = vadd.f32 %v1235, %v1284
        %v1293 = vadd.f32 %v1236, %v1285
        %v1294 = vadd.f32 %v1237, %v1286
        %v1295 = vld [vmem:[%s3] sm:$0x1]
        %v1296 = vld [vmem:[%s3 + $0x1] sm:$0x1]
        %v1297 = vld [vmem:[%s3 + $0x2] sm:$0x1]
        %v1298 = vld [vmem:[%s3 + $0x3] sm:$0x1]
        %v1303 = vlaneseq
        %v1304 = vshrl.u32 %v1303, 7
        %v1305 = vsub.s32 0, %v1304
        %v1306 = vrot.slane %v1295, %v1305
        %v1307 = vlaneseq
        %v1308 = vshrl.u32 %v1307, 7
        %v1309 = vsub.s32 0, %v1308
        %v1310 = vrot.slane %v1296, %v1309
        %v1311 = vlaneseq
        %v1312 = vshrl.u32 %v1311, 7
        %v1313 = vsub.s32 0, %v1312
        %v1314 = vrot.slane %v1297, %v1313
        %v1315 = vlaneseq
        %v1316 = vshrl.u32 %v1315, 7
        %v1317 = vsub.s32 0, %v1316
        %v1318 = vrot.slane %v1298, %v1317
        %1319 = vset.pattern.permute.xlu0 0
        %1320 = vperm.xlu0 %1319, %v1306
        %v1321 = vpop.permute.xlu0 %1320
        %1323 = vset.pattern.permute.xlu0 0
        %1324 = vperm.xlu0 %1323, %v1310
        %v1325 = vpop.permute.xlu0 %1324
        %1327 = vset.pattern.permute.xlu0 0
        %1328 = vperm.xlu0 %1327, %v1314
        %v1329 = vpop.permute.xlu0 %1328
        %1331 = vset.pattern.permute.xlu0 0
        %1332 = vperm.xlu0 %1331, %v1318
        %v1333 = vpop.permute.xlu0 %1332
        %v1335 = vadd.f32 %v1287, %v1321
        %v1336 = vadd.f32 %v1288, %v1321
        %v1337 = vadd.f32 %v1289, %v1325
        %v1338 = vadd.f32 %v1290, %v1325
        %v1339 = vadd.f32 %v1291, %v1329
        %v1340 = vadd.f32 %v1292, %v1329
        %v1341 = vadd.f32 %v1293, %v1333
        %v1342 = vadd.f32 %v1294, %v1333
        %v1343 = vmax.f32 %v1335, 0.0
        %v1344 = vmax.f32 %v1336, 0.0
        %v1345 = vmax.f32 %v1337, 0.0
        %v1346 = vmax.f32 %v1338, 0.0
        %v1347 = vmax.f32 %v1339, 0.0
        %v1348 = vmax.f32 %v1340, 0.0
        %v1349 = vmax.f32 %v1341, 0.0
        %v1350 = vmax.f32 %v1342, 0.0
        %1351 = vst.msk [vmem:[#allocation3] sm:$0xff] %vm277, 0.0
        %1352 = vst.msk [vmem:[#allocation3 + $0x8] sm:$0xff] %vm277, 0.0
        %1353 = vst.msk [vmem:[#allocation3 + $0x10] sm:$0x3] %vm280, 0.0
        %1354 = vst.msk [vmem:[#allocation3 + $0x18] sm:$0xff] %vm277, 0.0
        %1355 = vst.msk [vmem:[#allocation3 + $0x20] sm:$0xff] %vm277, 0.0
        %1356 = vst.msk [vmem:[#allocation3 + $0x28] sm:$0x3] %vm280, 0.0
        %1357 = vst.msk [vmem:[#allocation3 + $0x30] sm:$0xff] %vm277, 0.0
        %1358 = vst.msk [vmem:[#allocation3 + $0x38] sm:$0xff] %vm277, 0.0
        %1359 = vst.msk [vmem:[#allocation3 + $0x40] sm:$0x3] %vm280, 0.0
        %1360 = vst.msk [vmem:[#allocation3 + $0x48] sm:$0xff] %vm277, 0.0
        %1361 = vst.msk [vmem:[#allocation3 + $0x50] sm:$0xff] %vm277, 0.0
        %1362 = vst.msk [vmem:[#allocation3 + $0x58] sm:$0x3] %vm280, 0.0
        %1371 = vrot.lane.b32.xlu0 %v1343, 1
        %v1372 = vpop.permute.xlu0 %1371
        %1373 = vrot.lane.b32.xlu0 %v1344, 1
        %v1374 = vpop.permute.xlu0 %1373
        %1375 = vrot.lane.b32.xlu0 %v1345, 1
        %v1376 = vpop.permute.xlu0 %1375
        %1377 = vrot.lane.b32.xlu0 %v1346, 1
        %v1378 = vpop.permute.xlu0 %1377
        %1379 = vrot.lane.b32.xlu0 %v1347, 1
        %v1380 = vpop.permute.xlu0 %1379
        %1381 = vrot.lane.b32.xlu0 %v1348, 1
        %v1382 = vpop.permute.xlu0 %1381
        %1383 = vrot.lane.b32.xlu0 %v1349, 1
        %v1384 = vpop.permute.xlu0 %1383
        %1385 = vrot.lane.b32.xlu0 %v1350, 1
        %v1386 = vpop.permute.xlu0 %1385
        %1395 = vst.msk [vmem:[#allocation3 + $0x1] sm:$0xff] %vm331, %v1372
        %1396 = vst.msk [vmem:[#allocation3 + $0x9] sm:$0xff] %vm331, %v1374
        %1397 = vst.msk [vmem:[#allocation3 + $0x19] sm:$0xff] %vm331, %v1376
        %1398 = vst.msk [vmem:[#allocation3 + $0x21] sm:$0xff] %vm331, %v1378
        %1399 = vst.msk [vmem:[#allocation3 + $0x31] sm:$0xff] %vm331, %v1380
        %1400 = vst.msk [vmem:[#allocation3 + $0x39] sm:$0xff] %vm331, %v1382
        %1401 = vst.msk [vmem:[#allocation3 + $0x49] sm:$0xff] %vm331, %v1384
        %1402 = vst.msk [vmem:[#allocation3 + $0x51] sm:$0xff] %vm331, %v1386
        %v1403 = vld [vmem:[#allocation3] sm:$0xff]
        %v1404 = vld [vmem:[#allocation3 + $0x8] sm:$0xff]
        %v1405 = vld [vmem:[#allocation3 + $0x18] sm:$0xff]
        %v1406 = vld [vmem:[#allocation3 + $0x20] sm:$0xff]
        %v1407 = vld [vmem:[#allocation3 + $0x30] sm:$0xff]
        %v1408 = vld [vmem:[#allocation3 + $0x38] sm:$0xff]
        %v1409 = vld [vmem:[#allocation3 + $0x48] sm:$0xff]
        %v1410 = vld [vmem:[#allocation3 + $0x50] sm:$0xff]
        %v1411 = vld [vmem:[%s4] sm:$0x1]
        %v1412 = vld [vmem:[%s4 + $0x1] sm:$0x1]
        %v1413 = vld [vmem:[%s4 + $0x2] sm:$0x1]
        %v1414 = vld [vmem:[%s4 + $0x3] sm:$0x1]
        %v1419 = vlaneseq
        %v1420 = vshrl.u32 %v1419, 7
        %v1421 = vsub.s32 0, %v1420
        %v1422 = vrot.slane %v1411, %v1421
        %v1423 = vlaneseq
        %v1424 = vshrl.u32 %v1423, 7
        %v1425 = vsub.s32 0, %v1424
        %v1426 = vrot.slane %v1412, %v1425
        %v1427 = vlaneseq
        %v1428 = vshrl.u32 %v1427, 7
        %v1429 = vsub.s32 0, %v1428
        %v1430 = vrot.slane %v1413, %v1429
        %v1431 = vlaneseq
        %v1432 = vshrl.u32 %v1431, 7
        %v1433 = vsub.s32 0, %v1432
        %v1434 = vrot.slane %v1414, %v1433
        %1435 = vset.pattern.permute.xlu0 0
        %1436 = vperm.xlu0 %1435, %v1422
        %v1437 = vpop.permute.xlu0 %1436
        %1439 = vset.pattern.permute.xlu0 0
        %1440 = vperm.xlu0 %1439, %v1426
        %v1441 = vpop.permute.xlu0 %1440
        %1443 = vset.pattern.permute.xlu0 0
        %1444 = vperm.xlu0 %1443, %v1430
        %v1445 = vpop.permute.xlu0 %1444
        %1447 = vset.pattern.permute.xlu0 0
        %1448 = vperm.xlu0 %1447, %v1434
        %v1449 = vpop.permute.xlu0 %1448
        %v1451 = vmul.f32 %v1403, %v1437
        %v1452 = vmul.f32 %v1404, %v1437
        %v1453 = vmul.f32 %v1405, %v1441
        %v1454 = vmul.f32 %v1406, %v1441
        %v1455 = vmul.f32 %v1407, %v1445
        %v1456 = vmul.f32 %v1408, %v1445
        %v1457 = vmul.f32 %v1409, %v1449
        %v1458 = vmul.f32 %v1410, %v1449
        %v1459 = vadd.f32 %v1451, 0.0
        %v1460 = vadd.f32 %v1452, 0.0
        %v1461 = vadd.f32 %v1453, 0.0
        %v1462 = vadd.f32 %v1454, 0.0
        %v1463 = vadd.f32 %v1455, 0.0
        %v1464 = vadd.f32 %v1456, 0.0
        %v1465 = vadd.f32 %v1457, 0.0
        %v1466 = vadd.f32 %v1458, 0.0
        %s1467 = scalar_lea.vmem %s4, 4
        %v1468 = vld [vmem:[%s1467] sm:$0x1]
        %v1469 = vld [vmem:[%s1467 + $0x1] sm:$0x1]
        %v1470 = vld [vmem:[%s1467 + $0x2] sm:$0x1]
        %v1471 = vld [vmem:[%s1467 + $0x3] sm:$0x1]
        %v1476 = vlaneseq
        %v1477 = vshrl.u32 %v1476, 7
        %v1478 = vsub.s32 0, %v1477
        %v1479 = vrot.slane %v1468, %v1478
        %v1480 = vlaneseq
        %v1481 = vshrl.u32 %v1480, 7
        %v1482 = vsub.s32 0, %v1481
        %v1483 = vrot.slane %v1469, %v1482
        %v1484 = vlaneseq
        %v1485 = vshrl.u32 %v1484, 7
        %v1486 = vsub.s32 0, %v1485
        %v1487 = vrot.slane %v1470, %v1486
        %v1488 = vlaneseq
        %v1489 = vshrl.u32 %v1488, 7
        %v1490 = vsub.s32 0, %v1489
        %v1491 = vrot.slane %v1471, %v1490
        %1492 = vset.pattern.permute.xlu0 0
        %1493 = vperm.xlu0 %1492, %v1479
        %v1494 = vpop.permute.xlu0 %1493
        %1496 = vset.pattern.permute.xlu0 0
        %1497 = vperm.xlu0 %1496, %v1483
        %v1498 = vpop.permute.xlu0 %1497
        %1500 = vset.pattern.permute.xlu0 0
        %1501 = vperm.xlu0 %1500, %v1487
        %v1502 = vpop.permute.xlu0 %1501
        %1504 = vset.pattern.permute.xlu0 0
        %1505 = vperm.xlu0 %1504, %v1491
        %v1506 = vpop.permute.xlu0 %1505
        %v1508 = vmul.f32 %v1403, %v1494
        %v1509 = vmul.f32 %v1404, %v1494
        %v1510 = vmul.f32 %v1405, %v1498
        %v1511 = vmul.f32 %v1406, %v1498
        %v1512 = vmul.f32 %v1407, %v1502
        %v1513 = vmul.f32 %v1408, %v1502
        %v1514 = vmul.f32 %v1409, %v1506
        %v1515 = vmul.f32 %v1410, %v1506
        %1524 = vrot.lane.b32.xlu0 %v1508, 127
        %v1525 = vpop.permute.xlu0 %1524
        %1526 = vrot.lane.b32.xlu0 %v1509, 127
        %v1527 = vpop.permute.xlu0 %1526
        %1528 = vrot.lane.b32.xlu0 %v1510, 127
        %v1529 = vpop.permute.xlu0 %1528
        %1530 = vrot.lane.b32.xlu0 %v1511, 127
        %v1531 = vpop.permute.xlu0 %1530
        %1532 = vrot.lane.b32.xlu0 %v1512, 127
        %v1533 = vpop.permute.xlu0 %1532
        %1534 = vrot.lane.b32.xlu0 %v1513, 127
        %v1535 = vpop.permute.xlu0 %1534
        %1536 = vrot.lane.b32.xlu0 %v1514, 127
        %v1537 = vpop.permute.xlu0 %1536
        %1538 = vrot.lane.b32.xlu0 %v1515, 127
        %v1539 = vpop.permute.xlu0 %1538
        %v1548 = vadd.f32 %v1459, %v1525
        %v1549 = vadd.f32 %v1460, %v1527
        %v1550 = vadd.f32 %v1461, %v1529
        %v1551 = vadd.f32 %v1462, %v1531
        %v1552 = vadd.f32 %v1463, %v1533
        %v1553 = vadd.f32 %v1464, %v1535
        %v1554 = vadd.f32 %v1465, %v1537
        %v1555 = vadd.f32 %v1466, %v1539
        %s1556 = scalar_lea.vmem %s4, 8
        %v1557 = vld [vmem:[%s1556] sm:$0x1]
        %v1558 = vld [vmem:[%s1556 + $0x1] sm:$0x1]
        %v1559 = vld [vmem:[%s1556 + $0x2] sm:$0x1]
        %v1560 = vld [vmem:[%s1556 + $0x3] sm:$0x1]
        %v1565 = vlaneseq
        %v1566 = vshrl.u32 %v1565, 7
        %v1567 = vsub.s32 0, %v1566
        %v1568 = vrot.slane %v1557, %v1567
        %v1569 = vlaneseq
        %v1570 = vshrl.u32 %v1569, 7
        %v1571 = vsub.s32 0, %v1570
        %v1572 = vrot.slane %v1558, %v1571
        %v1573 = vlaneseq
        %v1574 = vshrl.u32 %v1573, 7
        %v1575 = vsub.s32 0, %v1574
        %v1576 = vrot.slane %v1559, %v1575
        %v1577 = vlaneseq
        %v1578 = vshrl.u32 %v1577, 7
        %v1579 = vsub.s32 0, %v1578
        %v1580 = vrot.slane %v1560, %v1579
        %1581 = vset.pattern.permute.xlu0 0
        %1582 = vperm.xlu0 %1581, %v1568
        %v1583 = vpop.permute.xlu0 %1582
        %1585 = vset.pattern.permute.xlu0 0
        %1586 = vperm.xlu0 %1585, %v1572
        %v1587 = vpop.permute.xlu0 %1586
        %1589 = vset.pattern.permute.xlu0 0
        %1590 = vperm.xlu0 %1589, %v1576
        %v1591 = vpop.permute.xlu0 %1590
        %1593 = vset.pattern.permute.xlu0 0
        %1594 = vperm.xlu0 %1593, %v1580
        %v1595 = vpop.permute.xlu0 %1594
        %v1597 = vmul.f32 %v1403, %v1583
        %v1598 = vmul.f32 %v1404, %v1583
        %v1599 = vmul.f32 %v1405, %v1587
        %v1600 = vmul.f32 %v1406, %v1587
        %v1601 = vmul.f32 %v1407, %v1591
        %v1602 = vmul.f32 %v1408, %v1591
        %v1603 = vmul.f32 %v1409, %v1595
        %v1604 = vmul.f32 %v1410, %v1595
        %1613 = vrot.lane.b32.xlu0 %v1597, 126
        %v1614 = vpop.permute.xlu0 %1613
        %1615 = vrot.lane.b32.xlu0 %v1598, 126
        %v1616 = vpop.permute.xlu0 %1615
        %1617 = vrot.lane.b32.xlu0 %v1599, 126
        %v1618 = vpop.permute.xlu0 %1617
        %1619 = vrot.lane.b32.xlu0 %v1600, 126
        %v1620 = vpop.permute.xlu0 %1619
        %1621 = vrot.lane.b32.xlu0 %v1601, 126
        %v1622 = vpop.permute.xlu0 %1621
        %1623 = vrot.lane.b32.xlu0 %v1602, 126
        %v1624 = vpop.permute.xlu0 %1623
        %1625 = vrot.lane.b32.xlu0 %v1603, 126
        %v1626 = vpop.permute.xlu0 %1625
        %1627 = vrot.lane.b32.xlu0 %v1604, 126
        %v1628 = vpop.permute.xlu0 %1627
        %v1637 = vadd.f32 %v1548, %v1614
        %v1638 = vadd.f32 %v1549, %v1616
        %v1639 = vadd.f32 %v1550, %v1618
        %v1640 = vadd.f32 %v1551, %v1620
        %v1641 = vadd.f32 %v1552, %v1622
        %v1642 = vadd.f32 %v1553, %v1624
        %v1643 = vadd.f32 %v1554, %v1626
        %v1644 = vadd.f32 %v1555, %v1628
        %v1645 = vld [vmem:[#allocation3 + $0x1] sm:$0xff]
        %v1646 = vld [vmem:[#allocation3 + $0x9] sm:$0xff]
        %v1647 = vld [vmem:[#allocation3 + $0x19] sm:$0xff]
        %v1648 = vld [vmem:[#allocation3 + $0x21] sm:$0xff]
        %v1649 = vld [vmem:[#allocation3 + $0x31] sm:$0xff]
        %v1650 = vld [vmem:[#allocation3 + $0x39] sm:$0xff]
        %v1651 = vld [vmem:[#allocation3 + $0x49] sm:$0xff]
        %v1652 = vld [vmem:[#allocation3 + $0x51] sm:$0xff]
        %s1653 = scalar_lea.vmem %s4, 12
        %v1654 = vld [vmem:[%s1653] sm:$0x1]
        %v1655 = vld [vmem:[%s1653 + $0x1] sm:$0x1]
        %v1656 = vld [vmem:[%s1653 + $0x2] sm:$0x1]
        %v1657 = vld [vmem:[%s1653 + $0x3] sm:$0x1]
        %v1662 = vlaneseq
        %v1663 = vshrl.u32 %v1662, 7
        %v1664 = vsub.s32 0, %v1663
        %v1665 = vrot.slane %v1654, %v1664
        %v1666 = vlaneseq
        %v1667 = vshrl.u32 %v1666, 7
        %v1668 = vsub.s32 0, %v1667
        %v1669 = vrot.slane %v1655, %v1668
        %v1670 = vlaneseq
        %v1671 = vshrl.u32 %v1670, 7
        %v1672 = vsub.s32 0, %v1671
        %v1673 = vrot.slane %v1656, %v1672
        %v1674 = vlaneseq
        %v1675 = vshrl.u32 %v1674, 7
        %v1676 = vsub.s32 0, %v1675
        %v1677 = vrot.slane %v1657, %v1676
        %1678 = vset.pattern.permute.xlu0 0
        %1679 = vperm.xlu0 %1678, %v1665
        %v1680 = vpop.permute.xlu0 %1679
        %1682 = vset.pattern.permute.xlu0 0
        %1683 = vperm.xlu0 %1682, %v1669
        %v1684 = vpop.permute.xlu0 %1683
        %1686 = vset.pattern.permute.xlu0 0
        %1687 = vperm.xlu0 %1686, %v1673
        %v1688 = vpop.permute.xlu0 %1687
        %1690 = vset.pattern.permute.xlu0 0
        %1691 = vperm.xlu0 %1690, %v1677
        %v1692 = vpop.permute.xlu0 %1691
        %v1694 = vmul.f32 %v1645, %v1680
        %v1695 = vmul.f32 %v1646, %v1680
        %v1696 = vmul.f32 %v1647, %v1684
        %v1697 = vmul.f32 %v1648, %v1684
        %v1698 = vmul.f32 %v1649, %v1688
        %v1699 = vmul.f32 %v1650, %v1688
        %v1700 = vmul.f32 %v1651, %v1692
        %v1701 = vmul.f32 %v1652, %v1692
        %v1702 = vadd.f32 %v1637, %v1694
        %v1703 = vadd.f32 %v1638, %v1695
        %v1704 = vadd.f32 %v1639, %v1696
        %v1705 = vadd.f32 %v1640, %v1697
        %v1706 = vadd.f32 %v1641, %v1698
        %v1707 = vadd.f32 %v1642, %v1699
        %v1708 = vadd.f32 %v1643, %v1700
        %v1709 = vadd.f32 %v1644, %v1701
        %s1710 = scalar_lea.vmem %s4, 16
        %v1711 = vld [vmem:[%s1710] sm:$0x1]
        %v1712 = vld [vmem:[%s1710 + $0x1] sm:$0x1]
        %v1713 = vld [vmem:[%s1710 + $0x2] sm:$0x1]
        %v1714 = vld [vmem:[%s1710 + $0x3] sm:$0x1]
        %v1719 = vlaneseq
        %v1720 = vshrl.u32 %v1719, 7
        %v1721 = vsub.s32 0, %v1720
        %v1722 = vrot.slane %v1711, %v1721
        %v1723 = vlaneseq
        %v1724 = vshrl.u32 %v1723, 7
        %v1725 = vsub.s32 0, %v1724
        %v1726 = vrot.slane %v1712, %v1725
        %v1727 = vlaneseq
        %v1728 = vshrl.u32 %v1727, 7
        %v1729 = vsub.s32 0, %v1728
        %v1730 = vrot.slane %v1713, %v1729
        %v1731 = vlaneseq
        %v1732 = vshrl.u32 %v1731, 7
        %v1733 = vsub.s32 0, %v1732
        %v1734 = vrot.slane %v1714, %v1733
        %1735 = vset.pattern.permute.xlu0 0
        %1736 = vperm.xlu0 %1735, %v1722
        %v1737 = vpop.permute.xlu0 %1736
        %1739 = vset.pattern.permute.xlu0 0
        %1740 = vperm.xlu0 %1739, %v1726
        %v1741 = vpop.permute.xlu0 %1740
        %1743 = vset.pattern.permute.xlu0 0
        %1744 = vperm.xlu0 %1743, %v1730
        %v1745 = vpop.permute.xlu0 %1744
        %1747 = vset.pattern.permute.xlu0 0
        %1748 = vperm.xlu0 %1747, %v1734
        %v1749 = vpop.permute.xlu0 %1748
        %v1751 = vmul.f32 %v1645, %v1737
        %v1752 = vmul.f32 %v1646, %v1737
        %v1753 = vmul.f32 %v1647, %v1741
        %v1754 = vmul.f32 %v1648, %v1741
        %v1755 = vmul.f32 %v1649, %v1745
        %v1756 = vmul.f32 %v1650, %v1745
        %v1757 = vmul.f32 %v1651, %v1749
        %v1758 = vmul.f32 %v1652, %v1749
        %1767 = vrot.lane.b32.xlu0 %v1751, 127
        %v1768 = vpop.permute.xlu0 %1767
        %1769 = vrot.lane.b32.xlu0 %v1752, 127
        %v1770 = vpop.permute.xlu0 %1769
        %1771 = vrot.lane.b32.xlu0 %v1753, 127
        %v1772 = vpop.permute.xlu0 %1771
        %1773 = vrot.lane.b32.xlu0 %v1754, 127
        %v1774 = vpop.permute.xlu0 %1773
        %1775 = vrot.lane.b32.xlu0 %v1755, 127
        %v1776 = vpop.permute.xlu0 %1775
        %1777 = vrot.lane.b32.xlu0 %v1756, 127
        %v1778 = vpop.permute.xlu0 %1777
        %1779 = vrot.lane.b32.xlu0 %v1757, 127
        %v1780 = vpop.permute.xlu0 %1779
        %1781 = vrot.lane.b32.xlu0 %v1758, 127
        %v1782 = vpop.permute.xlu0 %1781
        %v1791 = vadd.f32 %v1702, %v1768
        %v1792 = vadd.f32 %v1703, %v1770
        %v1793 = vadd.f32 %v1704, %v1772
        %v1794 = vadd.f32 %v1705, %v1774
        %v1795 = vadd.f32 %v1706, %v1776
        %v1796 = vadd.f32 %v1707, %v1778
        %v1797 = vadd.f32 %v1708, %v1780
        %v1798 = vadd.f32 %v1709, %v1782
        %s1799 = scalar_lea.vmem %s4, 20
        %v1800 = vld [vmem:[%s1799] sm:$0x1]
        %v1801 = vld [vmem:[%s1799 + $0x1] sm:$0x1]
        %v1802 = vld [vmem:[%s1799 + $0x2] sm:$0x1]
        %v1803 = vld [vmem:[%s1799 + $0x3] sm:$0x1]
        %v1808 = vlaneseq
        %v1809 = vshrl.u32 %v1808, 7
        %v1810 = vsub.s32 0, %v1809
        %v1811 = vrot.slane %v1800, %v1810
        %v1812 = vlaneseq
        %v1813 = vshrl.u32 %v1812, 7
        %v1814 = vsub.s32 0, %v1813
        %v1815 = vrot.slane %v1801, %v1814
        %v1816 = vlaneseq
        %v1817 = vshrl.u32 %v1816, 7
        %v1818 = vsub.s32 0, %v1817
        %v1819 = vrot.slane %v1802, %v1818
        %v1820 = vlaneseq
        %v1821 = vshrl.u32 %v1820, 7
        %v1822 = vsub.s32 0, %v1821
        %v1823 = vrot.slane %v1803, %v1822
        %1824 = vset.pattern.permute.xlu0 0
        %1825 = vperm.xlu0 %1824, %v1811
        %v1826 = vpop.permute.xlu0 %1825
        %1828 = vset.pattern.permute.xlu0 0
        %1829 = vperm.xlu0 %1828, %v1815
        %v1830 = vpop.permute.xlu0 %1829
        %1832 = vset.pattern.permute.xlu0 0
        %1833 = vperm.xlu0 %1832, %v1819
        %v1834 = vpop.permute.xlu0 %1833
        %1836 = vset.pattern.permute.xlu0 0
        %1837 = vperm.xlu0 %1836, %v1823
        %v1838 = vpop.permute.xlu0 %1837
        %v1840 = vmul.f32 %v1645, %v1826
        %v1841 = vmul.f32 %v1646, %v1826
        %v1842 = vmul.f32 %v1647, %v1830
        %v1843 = vmul.f32 %v1648, %v1830
        %v1844 = vmul.f32 %v1649, %v1834
        %v1845 = vmul.f32 %v1650, %v1834
        %v1846 = vmul.f32 %v1651, %v1838
        %v1847 = vmul.f32 %v1652, %v1838
        %1856 = vrot.lane.b32.xlu0 %v1840, 126
        %v1857 = vpop.permute.xlu0 %1856
        %1858 = vrot.lane.b32.xlu0 %v1841, 126
        %v1859 = vpop.permute.xlu0 %1858
        %1860 = vrot.lane.b32.xlu0 %v1842, 126
        %v1861 = vpop.permute.xlu0 %1860
        %1862 = vrot.lane.b32.xlu0 %v1843, 126
        %v1863 = vpop.permute.xlu0 %1862
        %1864 = vrot.lane.b32.xlu0 %v1844, 126
        %v1865 = vpop.permute.xlu0 %1864
        %1866 = vrot.lane.b32.xlu0 %v1845, 126
        %v1867 = vpop.permute.xlu0 %1866
        %1868 = vrot.lane.b32.xlu0 %v1846, 126
        %v1869 = vpop.permute.xlu0 %1868
        %1870 = vrot.lane.b32.xlu0 %v1847, 126
        %v1871 = vpop.permute.xlu0 %1870
        %v1880 = vadd.f32 %v1791, %v1857
        %v1881 = vadd.f32 %v1792, %v1859
        %v1882 = vadd.f32 %v1793, %v1861
        %v1883 = vadd.f32 %v1794, %v1863
        %v1884 = vadd.f32 %v1795, %v1865
        %v1885 = vadd.f32 %v1796, %v1867
        %v1886 = vadd.f32 %v1797, %v1869
        %v1887 = vadd.f32 %v1798, %v1871
        %v1888 = vld [vmem:[#allocation3 + $0x2] sm:$0xff]
        %v1889 = vld [vmem:[#allocation3 + $0xa] sm:$0xff]
        %v1890 = vld [vmem:[#allocation3 + $0x1a] sm:$0xff]
        %v1891 = vld [vmem:[#allocation3 + $0x22] sm:$0xff]
        %v1892 = vld [vmem:[#allocation3 + $0x32] sm:$0xff]
        %v1893 = vld [vmem:[#allocation3 + $0x3a] sm:$0xff]
        %v1894 = vld [vmem:[#allocation3 + $0x4a] sm:$0xff]
        %v1895 = vld [vmem:[#allocation3 + $0x52] sm:$0xff]
        %s1896 = scalar_lea.vmem %s4, 24
        %v1897 = vld [vmem:[%s1896] sm:$0x1]
        %v1898 = vld [vmem:[%s1896 + $0x1] sm:$0x1]
        %v1899 = vld [vmem:[%s1896 + $0x2] sm:$0x1]
        %v1900 = vld [vmem:[%s1896 + $0x3] sm:$0x1]
        %v1905 = vlaneseq
        %v1906 = vshrl.u32 %v1905, 7
        %v1907 = vsub.s32 0, %v1906
        %v1908 = vrot.slane %v1897, %v1907
        %v1909 = vlaneseq
        %v1910 = vshrl.u32 %v1909, 7
        %v1911 = vsub.s32 0, %v1910
        %v1912 = vrot.slane %v1898, %v1911
        %v1913 = vlaneseq
        %v1914 = vshrl.u32 %v1913, 7
        %v1915 = vsub.s32 0, %v1914
        %v1916 = vrot.slane %v1899, %v1915
        %v1917 = vlaneseq
        %v1918 = vshrl.u32 %v1917, 7
        %v1919 = vsub.s32 0, %v1918
        %v1920 = vrot.slane %v1900, %v1919
        %1921 = vset.pattern.permute.xlu0 0
        %1922 = vperm.xlu0 %1921, %v1908
        %v1923 = vpop.permute.xlu0 %1922
        %1925 = vset.pattern.permute.xlu0 0
        %1926 = vperm.xlu0 %1925, %v1912
        %v1927 = vpop.permute.xlu0 %1926
        %1929 = vset.pattern.permute.xlu0 0
        %1930 = vperm.xlu0 %1929, %v1916
        %v1931 = vpop.permute.xlu0 %1930
        %1933 = vset.pattern.permute.xlu0 0
        %1934 = vperm.xlu0 %1933, %v1920
        %v1935 = vpop.permute.xlu0 %1934
        %v1937 = vmul.f32 %v1888, %v1923
        %v1938 = vmul.f32 %v1889, %v1923
        %v1939 = vmul.f32 %v1890, %v1927
        %v1940 = vmul.f32 %v1891, %v1927
        %v1941 = vmul.f32 %v1892, %v1931
        %v1942 = vmul.f32 %v1893, %v1931
        %v1943 = vmul.f32 %v1894, %v1935
        %v1944 = vmul.f32 %v1895, %v1935
        %v1945 = vadd.f32 %v1880, %v1937
        %v1946 = vadd.f32 %v1881, %v1938
        %v1947 = vadd.f32 %v1882, %v1939
        %v1948 = vadd.f32 %v1883, %v1940
        %v1949 = vadd.f32 %v1884, %v1941
        %v1950 = vadd.f32 %v1885, %v1942
        %v1951 = vadd.f32 %v1886, %v1943
        %v1952 = vadd.f32 %v1887, %v1944
        %s1953 = scalar_lea.vmem %s4, 28
        %v1954 = vld [vmem:[%s1953] sm:$0x1]
        %v1955 = vld [vmem:[%s1953 + $0x1] sm:$0x1]
        %v1956 = vld [vmem:[%s1953 + $0x2] sm:$0x1]
        %v1957 = vld [vmem:[%s1953 + $0x3] sm:$0x1]
        %v1962 = vlaneseq
        %v1963 = vshrl.u32 %v1962, 7
        %v1964 = vsub.s32 0, %v1963
        %v1965 = vrot.slane %v1954, %v1964
        %v1966 = vlaneseq
        %v1967 = vshrl.u32 %v1966, 7
        %v1968 = vsub.s32 0, %v1967
        %v1969 = vrot.slane %v1955, %v1968
        %v1970 = vlaneseq
        %v1971 = vshrl.u32 %v1970, 7
        %v1972 = vsub.s32 0, %v1971
        %v1973 = vrot.slane %v1956, %v1972
        %v1974 = vlaneseq
        %v1975 = vshrl.u32 %v1974, 7
        %v1976 = vsub.s32 0, %v1975
        %v1977 = vrot.slane %v1957, %v1976
        %1978 = vset.pattern.permute.xlu0 0
        %1979 = vperm.xlu0 %1978, %v1965
        %v1980 = vpop.permute.xlu0 %1979
        %1982 = vset.pattern.permute.xlu0 0
        %1983 = vperm.xlu0 %1982, %v1969
        %v1984 = vpop.permute.xlu0 %1983
        %1986 = vset.pattern.permute.xlu0 0
        %1987 = vperm.xlu0 %1986, %v1973
        %v1988 = vpop.permute.xlu0 %1987
        %1990 = vset.pattern.permute.xlu0 0
        %1991 = vperm.xlu0 %1990, %v1977
        %v1992 = vpop.permute.xlu0 %1991
        %v1994 = vmul.f32 %v1888, %v1980
        %v1995 = vmul.f32 %v1889, %v1980
        %v1996 = vmul.f32 %v1890, %v1984
        %v1997 = vmul.f32 %v1891, %v1984
        %v1998 = vmul.f32 %v1892, %v1988
        %v1999 = vmul.f32 %v1893, %v1988
        %v2000 = vmul.f32 %v1894, %v1992
        %v2001 = vmul.f32 %v1895, %v1992
        %2010 = vrot.lane.b32.xlu0 %v1994, 127
        %v2011 = vpop.permute.xlu0 %2010
        %2012 = vrot.lane.b32.xlu0 %v1995, 127
        %v2013 = vpop.permute.xlu0 %2012
        %2014 = vrot.lane.b32.xlu0 %v1996, 127
        %v2015 = vpop.permute.xlu0 %2014
        %2016 = vrot.lane.b32.xlu0 %v1997, 127
        %v2017 = vpop.permute.xlu0 %2016
        %2018 = vrot.lane.b32.xlu0 %v1998, 127
        %v2019 = vpop.permute.xlu0 %2018
        %2020 = vrot.lane.b32.xlu0 %v1999, 127
        %v2021 = vpop.permute.xlu0 %2020
        %2022 = vrot.lane.b32.xlu0 %v2000, 127
        %v2023 = vpop.permute.xlu0 %2022
        %2024 = vrot.lane.b32.xlu0 %v2001, 127
        %v2025 = vpop.permute.xlu0 %2024
        %v2034 = vadd.f32 %v1945, %v2011
        %v2035 = vadd.f32 %v1946, %v2013
        %v2036 = vadd.f32 %v1947, %v2015
        %v2037 = vadd.f32 %v1948, %v2017
        %v2038 = vadd.f32 %v1949, %v2019
        %v2039 = vadd.f32 %v1950, %v2021
        %v2040 = vadd.f32 %v1951, %v2023
        %v2041 = vadd.f32 %v1952, %v2025
        %s2042 = scalar_lea.vmem %s4, 32
        %v2043 = vld [vmem:[%s2042] sm:$0x1]
        %v2044 = vld [vmem:[%s2042 + $0x1] sm:$0x1]
        %v2045 = vld [vmem:[%s2042 + $0x2] sm:$0x1]
        %v2046 = vld [vmem:[%s2042 + $0x3] sm:$0x1]
        %v2051 = vlaneseq
        %v2052 = vshrl.u32 %v2051, 7
        %v2053 = vsub.s32 0, %v2052
        %v2054 = vrot.slane %v2043, %v2053
        %v2055 = vlaneseq
        %v2056 = vshrl.u32 %v2055, 7
        %v2057 = vsub.s32 0, %v2056
        %v2058 = vrot.slane %v2044, %v2057
        %v2059 = vlaneseq
        %v2060 = vshrl.u32 %v2059, 7
        %v2061 = vsub.s32 0, %v2060
        %v2062 = vrot.slane %v2045, %v2061
        %v2063 = vlaneseq
        %v2064 = vshrl.u32 %v2063, 7
        %v2065 = vsub.s32 0, %v2064
        %v2066 = vrot.slane %v2046, %v2065
        %2067 = vset.pattern.permute.xlu0 0
        %2068 = vperm.xlu0 %2067, %v2054
        %v2069 = vpop.permute.xlu0 %2068
        %2071 = vset.pattern.permute.xlu0 0
        %2072 = vperm.xlu0 %2071, %v2058
        %v2073 = vpop.permute.xlu0 %2072
        %2075 = vset.pattern.permute.xlu0 0
        %2076 = vperm.xlu0 %2075, %v2062
        %v2077 = vpop.permute.xlu0 %2076
        %2079 = vset.pattern.permute.xlu0 0
        %2080 = vperm.xlu0 %2079, %v2066
        %v2081 = vpop.permute.xlu0 %2080
        %v2083 = vmul.f32 %v1888, %v2069
        %v2084 = vmul.f32 %v1889, %v2069
        %v2085 = vmul.f32 %v1890, %v2073
        %v2086 = vmul.f32 %v1891, %v2073
        %v2087 = vmul.f32 %v1892, %v2077
        %v2088 = vmul.f32 %v1893, %v2077
        %v2089 = vmul.f32 %v1894, %v2081
        %v2090 = vmul.f32 %v1895, %v2081
        %2099 = vrot.lane.b32.xlu0 %v2083, 126
        %v2100 = vpop.permute.xlu0 %2099
        %2101 = vrot.lane.b32.xlu0 %v2084, 126
        %v2102 = vpop.permute.xlu0 %2101
        %2103 = vrot.lane.b32.xlu0 %v2085, 126
        %v2104 = vpop.permute.xlu0 %2103
        %2105 = vrot.lane.b32.xlu0 %v2086, 126
        %v2106 = vpop.permute.xlu0 %2105
        %2107 = vrot.lane.b32.xlu0 %v2087, 126
        %v2108 = vpop.permute.xlu0 %2107
        %2109 = vrot.lane.b32.xlu0 %v2088, 126
        %v2110 = vpop.permute.xlu0 %2109
        %2111 = vrot.lane.b32.xlu0 %v2089, 126
        %v2112 = vpop.permute.xlu0 %2111
        %2113 = vrot.lane.b32.xlu0 %v2090, 126
        %v2114 = vpop.permute.xlu0 %2113
        %v2123 = vadd.f32 %v2034, %v2100
        %v2124 = vadd.f32 %v2035, %v2102
        %v2125 = vadd.f32 %v2036, %v2104
        %v2126 = vadd.f32 %v2037, %v2106
        %v2127 = vadd.f32 %v2038, %v2108
        %v2128 = vadd.f32 %v2039, %v2110
        %v2129 = vadd.f32 %v2040, %v2112
        %v2130 = vadd.f32 %v2041, %v2114
        %v2131 = vld [vmem:[%s5] sm:$0x1]
        %v2132 = vld [vmem:[%s5 + $0x1] sm:$0x1]
        %v2133 = vld [vmem:[%s5 + $0x2] sm:$0x1]
        %v2134 = vld [vmem:[%s5 + $0x3] sm:$0x1]
        %v2139 = vlaneseq
        %v2140 = vshrl.u32 %v2139, 7
        %v2141 = vsub.s32 0, %v2140
        %v2142 = vrot.slane %v2131, %v2141
        %v2143 = vlaneseq
        %v2144 = vshrl.u32 %v2143, 7
        %v2145 = vsub.s32 0, %v2144
        %v2146 = vrot.slane %v2132, %v2145
        %v2147 = vlaneseq
        %v2148 = vshrl.u32 %v2147, 7
        %v2149 = vsub.s32 0, %v2148
        %v2150 = vrot.slane %v2133, %v2149
        %v2151 = vlaneseq
        %v2152 = vshrl.u32 %v2151, 7
        %v2153 = vsub.s32 0, %v2152
        %v2154 = vrot.slane %v2134, %v2153
        %2155 = vset.pattern.permute.xlu0 0
        %2156 = vperm.xlu0 %2155, %v2142
        %v2157 = vpop.permute.xlu0 %2156
        %2159 = vset.pattern.permute.xlu0 0
        %2160 = vperm.xlu0 %2159, %v2146
        %v2161 = vpop.permute.xlu0 %2160
        %2163 = vset.pattern.permute.xlu0 0
        %2164 = vperm.xlu0 %2163, %v2150
        %v2165 = vpop.permute.xlu0 %2164
        %2167 = vset.pattern.permute.xlu0 0
        %2168 = vperm.xlu0 %2167, %v2154
        %v2169 = vpop.permute.xlu0 %2168
        %v2171 = vmul.f32 %v2157, %v2123
        %v2172 = vmul.f32 %v2157, %v2124
        %v2173 = vmul.f32 %v2161, %v2123
        %v2174 = vmul.f32 %v2161, %v2124
        %v2175 = vmul.f32 %v2165, %v2123
        %v2176 = vmul.f32 %v2165, %v2124
        %v2177 = vmul.f32 %v2169, %v2123
        %v2178 = vmul.f32 %v2169, %v2124
        %v2179 = vadd.f32 %v2171, 0.0
        %v2180 = vadd.f32 %v2172, 0.0
        %v2181 = vadd.f32 %v2173, 0.0
        %v2182 = vadd.f32 %v2174, 0.0
        %v2183 = vadd.f32 %v2175, 0.0
        %v2184 = vadd.f32 %v2176, 0.0
        %v2185 = vadd.f32 %v2177, 0.0
        %v2186 = vadd.f32 %v2178, 0.0
        %s2187 = scalar_lea.vmem %s5, 4
        %v2188 = vld [vmem:[%s2187] sm:$0x1]
        %v2189 = vld [vmem:[%s2187 + $0x1] sm:$0x1]
        %v2190 = vld [vmem:[%s2187 + $0x2] sm:$0x1]
        %v2191 = vld [vmem:[%s2187 + $0x3] sm:$0x1]
        %v2196 = vlaneseq
        %v2197 = vshrl.u32 %v2196, 7
        %v2198 = vsub.s32 0, %v2197
        %v2199 = vrot.slane %v2188, %v2198
        %v2200 = vlaneseq
        %v2201 = vshrl.u32 %v2200, 7
        %v2202 = vsub.s32 0, %v2201
        %v2203 = vrot.slane %v2189, %v2202
        %v2204 = vlaneseq
        %v2205 = vshrl.u32 %v2204, 7
        %v2206 = vsub.s32 0, %v2205
        %v2207 = vrot.slane %v2190, %v2206
        %v2208 = vlaneseq
        %v2209 = vshrl.u32 %v2208, 7
        %v2210 = vsub.s32 0, %v2209
        %v2211 = vrot.slane %v2191, %v2210
        %2212 = vset.pattern.permute.xlu0 0
        %2213 = vperm.xlu0 %2212, %v2199
        %v2214 = vpop.permute.xlu0 %2213
        %2216 = vset.pattern.permute.xlu0 0
        %2217 = vperm.xlu0 %2216, %v2203
        %v2218 = vpop.permute.xlu0 %2217
        %2220 = vset.pattern.permute.xlu0 0
        %2221 = vperm.xlu0 %2220, %v2207
        %v2222 = vpop.permute.xlu0 %2221
        %2224 = vset.pattern.permute.xlu0 0
        %2225 = vperm.xlu0 %2224, %v2211
        %v2226 = vpop.permute.xlu0 %2225
        %v2228 = vmul.f32 %v2214, %v2125
        %v2229 = vmul.f32 %v2214, %v2126
        %v2230 = vmul.f32 %v2218, %v2125
        %v2231 = vmul.f32 %v2218, %v2126
        %v2232 = vmul.f32 %v2222, %v2125
        %v2233 = vmul.f32 %v2222, %v2126
        %v2234 = vmul.f32 %v2226, %v2125
        %v2235 = vmul.f32 %v2226, %v2126
        %v2236 = vadd.f32 %v2179, %v2228
        %v2237 = vadd.f32 %v2180, %v2229
        %v2238 = vadd.f32 %v2181, %v2230
        %v2239 = vadd.f32 %v2182, %v2231
        %v2240 = vadd.f32 %v2183, %v2232
        %v2241 = vadd.f32 %v2184, %v2233
        %v2242 = vadd.f32 %v2185, %v2234
        %v2243 = vadd.f32 %v2186, %v2235
        %s2244 = scalar_lea.vmem %s5, 8
        %v2245 = vld [vmem:[%s2244] sm:$0x1]
        %v2246 = vld [vmem:[%s2244 + $0x1] sm:$0x1]
        %v2247 = vld [vmem:[%s2244 + $0x2] sm:$0x1]
        %v2248 = vld [vmem:[%s2244 + $0x3] sm:$0x1]
        %v2253 = vlaneseq
        %v2254 = vshrl.u32 %v2253, 7
        %v2255 = vsub.s32 0, %v2254
        %v2256 = vrot.slane %v2245, %v2255
        %v2257 = vlaneseq
        %v2258 = vshrl.u32 %v2257, 7
        %v2259 = vsub.s32 0, %v2258
        %v2260 = vrot.slane %v2246, %v2259
        %v2261 = vlaneseq
        %v2262 = vshrl.u32 %v2261, 7
        %v2263 = vsub.s32 0, %v2262
        %v2264 = vrot.slane %v2247, %v2263
        %v2265 = vlaneseq
        %v2266 = vshrl.u32 %v2265, 7
        %v2267 = vsub.s32 0, %v2266
        %v2268 = vrot.slane %v2248, %v2267
        %2269 = vset.pattern.permute.xlu0 0
        %2270 = vperm.xlu0 %2269, %v2256
        %v2271 = vpop.permute.xlu0 %2270
        %2273 = vset.pattern.permute.xlu0 0
        %2274 = vperm.xlu0 %2273, %v2260
        %v2275 = vpop.permute.xlu0 %2274
        %2277 = vset.pattern.permute.xlu0 0
        %2278 = vperm.xlu0 %2277, %v2264
        %v2279 = vpop.permute.xlu0 %2278
        %2281 = vset.pattern.permute.xlu0 0
        %2282 = vperm.xlu0 %2281, %v2268
        %v2283 = vpop.permute.xlu0 %2282
        %v2285 = vmul.f32 %v2271, %v2127
        %v2286 = vmul.f32 %v2271, %v2128
        %v2287 = vmul.f32 %v2275, %v2127
        %v2288 = vmul.f32 %v2275, %v2128
        %v2289 = vmul.f32 %v2279, %v2127
        %v2290 = vmul.f32 %v2279, %v2128
        %v2291 = vmul.f32 %v2283, %v2127
        %v2292 = vmul.f32 %v2283, %v2128
        %v2293 = vadd.f32 %v2236, %v2285
        %v2294 = vadd.f32 %v2237, %v2286
        %v2295 = vadd.f32 %v2238, %v2287
        %v2296 = vadd.f32 %v2239, %v2288
        %v2297 = vadd.f32 %v2240, %v2289
        %v2298 = vadd.f32 %v2241, %v2290
        %v2299 = vadd.f32 %v2242, %v2291
        %v2300 = vadd.f32 %v2243, %v2292
        %s2301 = scalar_lea.vmem %s5, 12
        %v2302 = vld [vmem:[%s2301] sm:$0x1]
        %v2303 = vld [vmem:[%s2301 + $0x1] sm:$0x1]
        %v2304 = vld [vmem:[%s2301 + $0x2] sm:$0x1]
        %v2305 = vld [vmem:[%s2301 + $0x3] sm:$0x1]
        %v2310 = vlaneseq
        %v2311 = vshrl.u32 %v2310, 7
        %v2312 = vsub.s32 0, %v2311
        %v2313 = vrot.slane %v2302, %v2312
        %v2314 = vlaneseq
        %v2315 = vshrl.u32 %v2314, 7
        %v2316 = vsub.s32 0, %v2315
        %v2317 = vrot.slane %v2303, %v2316
        %v2318 = vlaneseq
        %v2319 = vshrl.u32 %v2318, 7
        %v2320 = vsub.s32 0, %v2319
        %v2321 = vrot.slane %v2304, %v2320
        %v2322 = vlaneseq
        %v2323 = vshrl.u32 %v2322, 7
        %v2324 = vsub.s32 0, %v2323
        %v2325 = vrot.slane %v2305, %v2324
        %2326 = vset.pattern.permute.xlu0 0
        %2327 = vperm.xlu0 %2326, %v2313
        %v2328 = vpop.permute.xlu0 %2327
        %2330 = vset.pattern.permute.xlu0 0
        %2331 = vperm.xlu0 %2330, %v2317
        %v2332 = vpop.permute.xlu0 %2331
        %2334 = vset.pattern.permute.xlu0 0
        %2335 = vperm.xlu0 %2334, %v2321
        %v2336 = vpop.permute.xlu0 %2335
        %2338 = vset.pattern.permute.xlu0 0
        %2339 = vperm.xlu0 %2338, %v2325
        %v2340 = vpop.permute.xlu0 %2339
        %v2342 = vmul.f32 %v2328, %v2129
        %v2343 = vmul.f32 %v2328, %v2130
        %v2344 = vmul.f32 %v2332, %v2129
        %v2345 = vmul.f32 %v2332, %v2130
        %v2346 = vmul.f32 %v2336, %v2129
        %v2347 = vmul.f32 %v2336, %v2130
        %v2348 = vmul.f32 %v2340, %v2129
        %v2349 = vmul.f32 %v2340, %v2130
        %v2350 = vadd.f32 %v2293, %v2342
        %v2351 = vadd.f32 %v2294, %v2343
        %v2352 = vadd.f32 %v2295, %v2344
        %v2353 = vadd.f32 %v2296, %v2345
        %v2354 = vadd.f32 %v2297, %v2346
        %v2355 = vadd.f32 %v2298, %v2347
        %v2356 = vadd.f32 %v2299, %v2348
        %v2357 = vadd.f32 %v2300, %v2349
        %v2358 = vld [vmem:[%s6] sm:$0x1]
        %v2359 = vld [vmem:[%s6 + $0x1] sm:$0x1]
        %v2360 = vld [vmem:[%s6 + $0x2] sm:$0x1]
        %v2361 = vld [vmem:[%s6 + $0x3] sm:$0x1]
        %v2366 = vlaneseq
        %v2367 = vshrl.u32 %v2366, 7
        %v2368 = vsub.s32 0, %v2367
        %v2369 = vrot.slane %v2358, %v2368
        %v2370 = vlaneseq
        %v2371 = vshrl.u32 %v2370, 7
        %v2372 = vsub.s32 0, %v2371
        %v2373 = vrot.slane %v2359, %v2372
        %v2374 = vlaneseq
        %v2375 = vshrl.u32 %v2374, 7
        %v2376 = vsub.s32 0, %v2375
        %v2377 = vrot.slane %v2360, %v2376
        %v2378 = vlaneseq
        %v2379 = vshrl.u32 %v2378, 7
        %v2380 = vsub.s32 0, %v2379
        %v2381 = vrot.slane %v2361, %v2380
        %2382 = vset.pattern.permute.xlu0 0
        %2383 = vperm.xlu0 %2382, %v2369
        %v2384 = vpop.permute.xlu0 %2383
        %2386 = vset.pattern.permute.xlu0 0
        %2387 = vperm.xlu0 %2386, %v2373
        %v2388 = vpop.permute.xlu0 %2387
        %2390 = vset.pattern.permute.xlu0 0
        %2391 = vperm.xlu0 %2390, %v2377
        %v2392 = vpop.permute.xlu0 %2391
        %2394 = vset.pattern.permute.xlu0 0
        %2395 = vperm.xlu0 %2394, %v2381
        %v2396 = vpop.permute.xlu0 %2395
        %v2398 = vadd.f32 %v2350, %v2384
        %v2399 = vadd.f32 %v2351, %v2384
        %v2400 = vadd.f32 %v2352, %v2388
        %v2401 = vadd.f32 %v2353, %v2388
        %v2402 = vadd.f32 %v2354, %v2392
        %v2403 = vadd.f32 %v2355, %v2392
        %v2404 = vadd.f32 %v2356, %v2396
        %v2405 = vadd.f32 %v2357, %v2396
        %v2406 = vmax.f32 %v2398, 0.0
        %v2407 = vmax.f32 %v2399, 0.0
        %v2408 = vmax.f32 %v2400, 0.0
        %v2409 = vmax.f32 %v2401, 0.0
        %v2410 = vmax.f32 %v2402, 0.0
        %v2411 = vmax.f32 %v2403, 0.0
        %v2412 = vmax.f32 %v2404, 0.0
        %v2413 = vmax.f32 %v2405, 0.0
        %vm2414 = vcmask 130048
        %2415 = vst.msk [vmem:[%s271] sm:$0xff] %vm2414, %v2406
        %2416 = vst.msk [vmem:[%s271 + $0x8] sm:$0xff] %vm2414, %v2407
        %2417 = vst.msk [vmem:[%s271 + $0x10] sm:$0xff] %vm2414, %v2408
        %2418 = vst.msk [vmem:[%s271 + $0x18] sm:$0xff] %vm2414, %v2409
        %2419 = vst.msk [vmem:[%s271 + $0x20] sm:$0xff] %vm2414, %v2410
        %2420 = vst.msk [vmem:[%s271 + $0x28] sm:$0xff] %vm2414, %v2411
        %2421 = vst.msk [vmem:[%s271 + $0x30] sm:$0xff] %vm2414, %v2412
        %2422 = vst.msk [vmem:[%s271 + $0x38] sm:$0xff] %vm2414, %v2413
        %s2423 = sand.u32 %s181, 1
        %s2424 = scalar_lea.sflag [#allocation5], %s2423
        %s2425 = sand.u32 %s181, 1
        %s2426 = smul.addr %s2425, 64
        %s2427 = scalar_lea.vmem [#allocation4], %s2426
        // Predicated region
        $region49: #{sepconv_pallas.1} parent=47 // pred_check
          %p2428 = pneg %p191
        $region50: #{sepconv_pallas.1} parent=47 // pred_check_branch
          %2430 = sbr.rel (%p2428) target = $region52
        $region51: #{sepconv_pallas.1} parent=47 // pred_region
          %s2432 = ssub.s32 1024, 1024
          %2433 = vsyncadd %s2424, %s2432
          %s2434 = smul.addr %s21, 8
          %s2435 = smul.addr %s2434, 128
          %s2436 = scalar_lea.hbm %s7, %s2435
          %s2437 = sshll.u32 %s2427, 4
          %s2438 = int_to_ptr.vmem [resolvable:$true] %s2437
          %2443 = dma.vmem_to_hbm [thread:$0]  %s2438, 1024, %s2436, %s2424, 128, 128, 8
        $region52: #{sepconv_pallas.1} parent=47 // pred_fallthru
          _
      $region48: #{sepconv_pallas.1} parent=5 // pred_fallthru
        _
      %p2444 = scmp.le.s32.totalorder 2, %s16
      // Predicated region
      $region53: #{sepconv_pallas.1} parent=5 // pred_check
        %p2445 = pneg %p2444
      $region54: #{sepconv_pallas.1} parent=5 // pred_check_branch
        %2447 = sbr.rel (%p2445) target = $region56
      $region55: #{sepconv_pallas.1} parent=5 // pred_region
        %s2448 = ssub.s32 %s16, 2
        // Predicated region
        $region57: #{sepconv_pallas.1} parent=55 // pred_check
          %p2449 = pneg %p197
        $region58: #{sepconv_pallas.1} parent=55 // pred_check_branch
          %2451 = sbr.rel (%p2449) target = $region60
        $region59: #{sepconv_pallas.1} parent=55 // pred_region
          %s2452 = sand.u32 %s182, 1
          %s2453 = scalar_lea.sflag [#allocation5], %s2452
          %s2454 = sand.u32 %s182, 1
          %s2455 = smul.addr %s2454, 64
          %s2456 = scalar_lea.vmem [#allocation4], %s2455
          %2457 = dma.done %s2453, 1024
        $region60: #{sepconv_pallas.1} parent=55 // pred_fallthru
          _
      $region56: #{sepconv_pallas.1} parent=5 // pred_fallthru
        _
    $region6: #{sepconv_pallas.1} parent=1 // loop_footer
      %s20 = sadd.s32 1, %s16
    $region7: #{sepconv_pallas.1} parent=1 // loop_footer_branch
      %15 = sbr.rel target = $region3
    $region8: #{sepconv_pallas.1} parent=1 // loop_exit
      _
    %2458 = vsyncpa [#allocation5], 1
    %s2459 = scalar_lea.sflag [#allocation5], 1
    %2460 = vsyncpa %s2459, 1

</llo_original>
